<compile_context>
chip_gen: v7x
topology: tpu7x:2x2x1
jax: 0.10.0
libtpu: 0.0.40
codegen_flags: <defaults>
</compile_context>

<pallas_src>
import jax
import jax.numpy as jnp
from jax import lax
from jax.experimental import pallas as pl
from jax.experimental.pallas import tpu as pltpu

H = 128          # GRU hidden size / LayerNorm width (fixed by the module)
D_IN = 64        # GRU input size (fixed by the module)
BASE = 3.0       # self.base
LN_EPS = 1e-5


def _gru_heads_kernel(x_ref, wih_ref, whh_ref, bih_ref, bhh_ref,
                      gam_ref, bet_ref, hw_ref, g_ref,
                      imp_ref, cur_ref,
                      h_all_ref, im_ref):
    """One invocation computes the whole (small) sequence.

    x_ref   : (L, 64)   f32   GRU inputs (self.inputs, batch squeezed)
    wih_ref : (64, 384) bf16  W_ih^T, gate order [r, z, n] (torch convention)
    whh_ref : (128,384) bf16  W_hh^T
    bih_ref : (1, 384)  f32   b_ih
    bhh_ref : (1, 384)  f32   b_hh
    gam_ref : (1, 128)  f32   LayerNorm weight
    bet_ref : (1, 128)  f32   LayerNorm bias
    hw_ref  : (L,128,Nmax) bf16  stacked, zero-padded head weights (W^T)
    g_ref   : (L, Nmax) f32   gumbel noise
    imp_ref : (L, Nmax) f32   out: sigmoid(im + g + base)
    cur_ref : (L, Nmax) f32   out: sigmoid((im + g + base) / 0.4)
    h_all_ref : (L, 128) f32  scratch: GRU hidden states per step
    im_ref    : (L, Nmax) f32 scratch: head outputs per layer
    """
    L = x_ref.shape[0]

    # ---------------- hoisted work (off the recurrent critical path) -------
    bih = bih_ref[...]
    bhh = bhh_ref[...]
    whh = whh_ref[...]                                              # bf16

    # One batched input projection for every timestep; fold b_ih, and fold
    # the r/z half of b_hh so the loop body has no bias adds for r/z.
    gi_all = jnp.dot(x_ref[...].astype(jnp.bfloat16), wih_ref[...],
                     preferred_element_type=jnp.float32) + bih      # (L, 384)
    gi_rz = gi_all[:, :2 * H] + bhh[:, :2 * H]                      # (L, 256)
    gi_n = gi_all[:, 2 * H:3 * H]                                   # (L, 128)
    bhh_n = bhh[:, 2 * H:3 * H]                                     # (1, 128)

    # ---------------- serial GRU recurrence (the only true serial chain) ---
    # L is a small static Python int: a plain Python loop fully unrolls with
    # static indices, giving the scheduler cross-step visibility.
    h = jnp.zeros((1, H), jnp.float32)          # h0 = zeros(1, 1, 128)
    for t in range(L):
        gh = jnp.dot(h.astype(jnp.bfloat16), whh,
                     preferred_element_type=jnp.float32)            # (1, 384)
        rz = jax.nn.sigmoid(gi_rz[t:t + 1, :] + gh[:, :2 * H])      # fused 256-wide
        r = rz[:, :H]
        z = rz[:, H:2 * H]
        n = jnp.tanh(gi_n[t:t + 1, :] + r * (gh[:, 2 * H:3 * H] + bhh_n))
        h = (1.0 - z) * n + z * h                                   # (1, 128)
        h_all_ref[pl.ds(t, 1), :] = h

    # ---------------- batched epilogue: LN + ReLU + heads + sigmoids -------
    h_all = h_all_ref[...]                                          # (L, 128)
    mu = jnp.mean(h_all, axis=-1, keepdims=True)
    var = jnp.mean((h_all - mu) ** 2, axis=-1, keepdims=True)
    y = (h_all - mu) * lax.rsqrt(var + LN_EPS) * gam_ref[...] + bet_ref[...]
    y = jnp.maximum(y, 0.0).astype(jnp.bfloat16)                    # (L, 128)

    # Per-layer heads: Linear(128, structure[t], bias=False), zero padded.
    for t in range(L):
        im_ref[pl.ds(t, 1), :] = jnp.dot(
            y[t:t + 1, :], hw_ref[t], preferred_element_type=jnp.float32)

    zval = im_ref[...] + g_ref[...] + BASE                          # (L, Nmax)
    imp_ref[...] = jax.nn.sigmoid(zval)
    cur_ref[...] = jax.nn.sigmoid(zval * 2.5)   # == sigmoid(zval / 0.4)


@jax.jit
def gru_heads(x, wih_t, whh_t, bih, bhh, gamma, beta, head_w, g):
    L = x.shape[0]
    nmax = head_w.shape[-1]

    # bf16 weights at the call boundary (MXU-native on v5e/v6e/v7x);
    # activations, biases and LN stay f32 (v5e has no bf16 VPU/EUP).
    wih_bf = wih_t.astype(jnp.bfloat16)
    whh_bf = whh_t.astype(jnp.bfloat16)
    hw_bf = head_w.astype(jnp.bfloat16)

    def full_spec(shape):
        nd = len(shape)
        return pl.BlockSpec(shape, lambda i, _nd=nd: (0,) * _nd)

    imp, cur = pl.pallas_call(
        _gru_heads_kernel,
        grid=(1,),
        in_specs=[
            full_spec(x.shape),
            full_spec(wih_bf.shape),
            full_spec(whh_bf.shape),
            full_spec(bih.shape),
            full_spec(bhh.shape),
            full_spec(gamma.shape),
            full_spec(beta.shape),
            full_spec(hw_bf.shape),
            full_spec(g.shape),
        ],
        out_specs=[
            full_spec((L, nmax)),
            full_spec((L, nmax)),
        ],
        out_shape=[
            jax.ShapeDtypeStruct((L, nmax), jnp.float32),
            jax.ShapeDtypeStruct((L, nmax), jnp.float32),
        ],
        scratch_shapes=[
            pltpu.VMEM((L, H), jnp.float32),      # per-step hidden states
            pltpu.VMEM((L, nmax), jnp.float32),   # per-layer head outputs
        ],
        compiler_params=pltpu.CompilerParams(
            dimension_semantics=("arbitrary",)),
    )(x, wih_bf, whh_bf, bih, bhh, gamma, beta, hw_bf, g)
    return imp, cur


def importance_generator_ip_forward(k_masks, params, structure, g_noise):
    """Training-mode forward (score_function='sigmoid', ipout=False)."""
    imp_pad, cur_pad = gru_heads(
        params["inputs"], params["wih_t"], params["whh_t"],
        params["bih"], params["bhh"], params["ln_gamma"], params["ln_beta"],
        params["head_w"], g_noise)

    ori_masks = []
    for i, n in enumerate(structure):
        importance = imp_pad[i, :n]           # sigmoid(im + g + base).squeeze()
        current_out = cur_pad[i, :n]          # sigmoid((im + g + base)/0.4)
        # torch: _, index = torch.sort(importance, descending=True)
        #        c_mask = k_masks[i].gather(0, index.argsort())
        # TODO(synk): sort/rank-gather has no clean Pallas TPU equivalent; done
        # in plain JAX (stable argsort; torch.sort tie-breaking may differ).
        index = jnp.argsort(-importance)
        ranks = jnp.argsort(index)
        c_mask = k_masks[i][ranks] * current_out
        ori_masks.append(c_mask)
        # TODO(synk): the r_list EMA update is a training-statistics side
        # effect that does not influence the training-mode output; omitted.
    return ori_masks


def make_params(key, structure):
    L = len(structure)
    nmax = max(128, max(structure))  # pad heads to a lane-dense width
    ks = jax.random.split(key, 8)
    k_gru = 1.0 / jnp.sqrt(H)

    # self.inputs: orthogonal rows, shape (L, 1, 64) -> stored (L, 64)
    a = jax.random.normal(ks[0], (D_IN, L), jnp.float32)
    q, _ = jnp.linalg.qr(a)
    inputs = q.T.astype(jnp.float32)                      # (L, 64) orthonormal rows

    wih = jax.random.uniform(ks[1], (3 * H, D_IN), jnp.float32, -k_gru, k_gru)
    whh = jax.random.uniform(ks[2], (3 * H, H), jnp.float32, -k_gru, k_gru)
    bih = jax.random.uniform(ks[3], (3 * H,), jnp.float32, -k_gru, k_gru)
    bhh = jax.random.uniform(ks[4], (3 * H,), jnp.float32, -k_gru, k_gru)

    # per-layer Linear(128, structure[i], bias=False), zero-padded & stacked
    head_w = jnp.zeros((L, H, nmax), jnp.float32)
    hk = jax.random.split(ks[5], L)
    k_lin = 1.0 / jnp.sqrt(H)
    for i, n in enumerate(structure):
        w_i = jax.random.uniform(hk[i], (n, H), jnp.float32, -k_lin, k_lin)
        head_w = head_w.at[i, :, :n].set(w_i.T)

    params = dict(
        inputs=inputs,
        wih_t=wih.T,                      # (64, 384)
        whh_t=whh.T,                      # (128, 384)
        bih=bih[None, :],                 # (1, 384)
        bhh=bhh[None, :],                 # (1, 384)
        ln_gamma=jnp.ones((1, H), jnp.float32),
        ln_beta=jnp.zeros((1, H), jnp.float32),
        head_w=head_w,                    # (L, 128, Nmax)
    )
    return params, nmax


if __name__ == "__main__":
    structure = [16, 32, 48, 64]          # small per-layer widths
    L = len(structure)

    key = jax.random.PRNGKey(0)
    k_params, k_masks_key, k_gumbel = jax.random.split(key, 3)

    params, nmax = make_params(k_params, structure)

    # k_masks: one mask vector per layer (values in {0,1}, like keep-masks)
    mk = jax.random.split(k_masks_key, L)
    k_masks = [
        (jax.random.uniform(mk[i], (structure[i],), jnp.float32) > 0.5
         ).astype(jnp.float32)
        for i in range(L)
    ]

    # sample_gumbel: -log(-log(U + eps) + eps), training mode
    eps = 1e-20
    U = jax.random.uniform(k_gumbel, (L, nmax), jnp.float32)
    g_noise = -jnp.log(-jnp.log(U + eps) + eps)

    ori_masks = importance_generator_ip_forward(k_masks, params, structure,
                                                g_noise)
    ori_masks = jax.block_until_ready(ori_masks)

    assert len(ori_masks) == L
    for i, n in enumerate(structure):
        assert ori_masks[i].shape == (n,)
        assert bool(jnp.all(jnp.isfinite(ori_masks[i])))
    print("KERNEL_OK")
</pallas_src>

<mosaic_0001>
module attributes {stable_mosaic.version = 11 : i64} {
  func.func @_gru_heads_kernel(%arg0: i32, %arg1: memref<4x64xf32, #tpu.memory_space<vmem>>, %arg2: memref<64x384xbf16, #tpu.memory_space<vmem>>, %arg3: memref<128x384xbf16, #tpu.memory_space<vmem>>, %arg4: memref<1x384xf32, #tpu.memory_space<vmem>>, %arg5: memref<1x384xf32, #tpu.memory_space<vmem>>, %arg6: memref<1x128xf32, #tpu.memory_space<vmem>>, %arg7: memref<1x128xf32, #tpu.memory_space<vmem>>, %arg8: memref<4x128x128xbf16, #tpu.memory_space<vmem>>, %arg9: memref<4x128xf32, #tpu.memory_space<vmem>>, %arg10: memref<4x128xf32, #tpu.memory_space<vmem>>, %arg11: memref<4x128xf32, #tpu.memory_space<vmem>>, %arg12: memref<4x128xf32, #tpu.memory_space<vmem>>, %arg13: memref<4x128xf32, #tpu.memory_space<vmem>>) attributes {dimension_semantics = [#tpu.dimension_semantics<arbitrary>], iteration_bounds = array<i64: 1>, scalar_prefetch = 0 : i64, scratch_operands = 2 : i64, tpu.core_type = #tpu.core_type<tc>, window_params = [{pipeline_mode = #tpu.pipeline_mode<synchronous>, transform_indices = @transform_0, window_bounds = array<i64: 4, 64>}, {pipeline_mode = #tpu.pipeline_mode<synchronous>, transform_indices = @transform_1, window_bounds = array<i64: 64, 384>}, {pipeline_mode = #tpu.pipeline_mode<synchronous>, transform_indices = @transform_2, window_bounds = array<i64: 128, 384>}, {pipeline_mode = #tpu.pipeline_mode<synchronous>, transform_indices = @transform_3, window_bounds = array<i64: 1, 384>}, {pipeline_mode = #tpu.pipeline_mode<synchronous>, transform_indices = @transform_4, window_bounds = array<i64: 1, 384>}, {pipeline_mode = #tpu.pipeline_mode<synchronous>, transform_indices = @transform_5, window_bounds = array<i64: 1, 128>}, {pipeline_mode = #tpu.pipeline_mode<synchronous>, transform_indices = @transform_6, window_bounds = array<i64: 1, 128>}, {pipeline_mode = #tpu.pipeline_mode<synchronous>, transform_indices = @transform_7, window_bounds = array<i64: 4, 128, 128>}, {pipeline_mode = #tpu.pipeline_mode<synchronous>, transform_indices = @transform_8, window_bounds = array<i64: 4, 128>}, {pipeline_mode = #tpu.pipeline_mode<synchronous>, transform_indices = @transform_9, window_bounds = array<i64: 4, 128>}, {pipeline_mode = #tpu.pipeline_mode<synchronous>, transform_indices = @transform_10, window_bounds = array<i64: 4, 128>}]} {
    %c0 = arith.constant 0 : index
    %c0_0 = arith.constant 0 : index
    %0 = vector.load %arg4[%c0, %c0_0] : memref<1x384xf32, #tpu.memory_space<vmem>>, vector<1x384xf32>
    %c0_1 = arith.constant 0 : index
    %c0_2 = arith.constant 0 : index
    %1 = vector.load %arg5[%c0_1, %c0_2] : memref<1x384xf32, #tpu.memory_space<vmem>>, vector<1x384xf32>
    %c0_3 = arith.constant 0 : index
    %c0_4 = arith.constant 0 : index
    %2 = vector.load %arg3[%c0_3, %c0_4] : memref<128x384xbf16, #tpu.memory_space<vmem>>, vector<128x384xbf16>
    %c0_5 = arith.constant 0 : index
    %c0_6 = arith.constant 0 : index
    %3 = vector.load %arg1[%c0_5, %c0_6] : memref<4x64xf32, #tpu.memory_space<vmem>>, vector<4x64xf32>
    %4 = arith.truncf %3 : vector<4x64xf32> to vector<4x64xbf16>
    %c0_7 = arith.constant 0 : index
    %c0_8 = arith.constant 0 : index
    %5 = vector.load %arg2[%c0_7, %c0_8] : memref<64x384xbf16, #tpu.memory_space<vmem>>, vector<64x384xbf16>
    %cst = arith.constant dense<0.000000e+00> : vector<4x384xf32>
    %6 = tpu.matmul %4, %5, %cst {dimension_numbers = #tpu.dot_dimension_numbers<[1], [0], [0], [1], [0, 0, 1, 1], [], []>} : vector<4x64xbf16>, vector<64x384xbf16>, vector<4x384xf32> -> vector<4x384xf32>
    %7 = vector.broadcast %0 : vector<1x384xf32> to vector<4x384xf32>
    %8 = arith.addf %6, %7 : vector<4x384xf32>
    %9 = vector.extract_strided_slice %8 {offsets = [0, 0], sizes = [4, 256], strides = [1, 1]} : vector<4x384xf32> to vector<4x256xf32>
    %10 = vector.extract_strided_slice %1 {offsets = [0, 0], sizes = [1, 256], strides = [1, 1]} : vector<1x384xf32> to vector<1x256xf32>
    %11 = vector.broadcast %10 : vector<1x256xf32> to vector<4x256xf32>
    %12 = arith.addf %9, %11 : vector<4x256xf32>
    %13 = vector.extract_strided_slice %8 {offsets = [0, 256], sizes = [4, 128], strides = [1, 1]} : vector<4x384xf32> to vector<4x128xf32>
    %14 = vector.extract_strided_slice %1 {offsets = [0, 256], sizes = [1, 128], strides = [1, 1]} : vector<1x384xf32> to vector<1x128xf32>
    %cst_9 = arith.constant 0.000000e+00 : f32
    %15 = vector.broadcast %cst_9 : f32 to vector<1x128xf32>
    %16 = arith.truncf %15 : vector<1x128xf32> to vector<1x128xbf16>
    %cst_10 = arith.constant dense<0.000000e+00> : vector<1x384xf32>
    %17 = tpu.matmul %16, %2, %cst_10 {dimension_numbers = #tpu.dot_dimension_numbers<[1], [0], [0], [1], [0, 0, 1, 1], [], []>} : vector<1x128xbf16>, vector<128x384xbf16>, vector<1x384xf32> -> vector<1x384xf32>
    %18 = vector.extract_strided_slice %12 {offsets = [0, 0], sizes = [1, 256], strides = [1, 1]} : vector<4x256xf32> to vector<1x256xf32>
    %19 = vector.extract_strided_slice %17 {offsets = [0, 0], sizes = [1, 256], strides = [1, 1]} : vector<1x384xf32> to vector<1x256xf32>
    %20 = arith.addf %18, %19 : vector<1x256xf32>
    %21 = arith.negf %20 : vector<1x256xf32>
    %22 = math.exp %21 : vector<1x256xf32>
    %cst_11 = arith.constant 1.000000e+00 : f32
    %23 = vector.broadcast %cst_11 : f32 to vector<1x256xf32>
    %24 = arith.addf %23, %22 : vector<1x256xf32>
    %25 = arith.divf %23, %24 : vector<1x256xf32>
    %26 = vector.extract_strided_slice %25 {offsets = [0, 0], sizes = [1, 128], strides = [1, 1]} : vector<1x256xf32> to vector<1x128xf32>
    %27 = vector.extract_strided_slice %25 {offsets = [0, 128], sizes = [1, 128], strides = [1, 1]} : vector<1x256xf32> to vector<1x128xf32>
    %28 = vector.extract_strided_slice %13 {offsets = [0, 0], sizes = [1, 128], strides = [1, 1]} : vector<4x128xf32> to vector<1x128xf32>
    %29 = vector.extract_strided_slice %17 {offsets = [0, 256], sizes = [1, 128], strides = [1, 1]} : vector<1x384xf32> to vector<1x128xf32>
    %30 = arith.addf %29, %14 : vector<1x128xf32>
    %31 = arith.mulf %26, %30 : vector<1x128xf32>
    %32 = arith.addf %28, %31 : vector<1x128xf32>
    %33 = math.tanh %32 : vector<1x128xf32>
    %cst_12 = arith.constant 1.000000e+00 : f32
    %34 = vector.broadcast %cst_12 : f32 to vector<1x128xf32>
    %35 = arith.subf %34, %27 : vector<1x128xf32>
    %36 = arith.mulf %35, %33 : vector<1x128xf32>
    %37 = arith.mulf %27, %15 : vector<1x128xf32>
    %38 = arith.addf %36, %37 : vector<1x128xf32>
    %c0_13 = arith.constant 0 : index
    %c0_14 = arith.constant 0 : index
    %39 = vector.load %arg12[%c0_13, %c0_14] : memref<4x128xf32, #tpu.memory_space<vmem>>, vector<1x128xf32>
    tpu.vector_store %arg12[%c0_13, %c0_14], %38 {strides = array<i32>} : memref<4x128xf32, #tpu.memory_space<vmem>>, vector<1x128xf32>,
    %40 = arith.truncf %38 : vector<1x128xf32> to vector<1x128xbf16>
    %cst_15 = arith.constant dense<0.000000e+00> : vector<1x384xf32>
    %41 = tpu.matmul %40, %2, %cst_15 {dimension_numbers = #tpu.dot_dimension_numbers<[1], [0], [0], [1], [0, 0, 1, 1], [], []>} : vector<1x128xbf16>, vector<128x384xbf16>, vector<1x384xf32> -> vector<1x384xf32>
    %42 = vector.extract_strided_slice %12 {offsets = [1, 0], sizes = [1, 256], strides = [1, 1]} : vector<4x256xf32> to vector<1x256xf32>
    %43 = vector.extract_strided_slice %41 {offsets = [0, 0], sizes = [1, 256], strides = [1, 1]} : vector<1x384xf32> to vector<1x256xf32>
    %44 = arith.addf %42, %43 : vector<1x256xf32>
    %45 = arith.negf %44 : vector<1x256xf32>
    %46 = math.exp %45 : vector<1x256xf32>
    %cst_16 = arith.constant 1.000000e+00 : f32
    %47 = vector.broadcast %cst_16 : f32 to vector<1x256xf32>
    %48 = arith.addf %47, %46 : vector<1x256xf32>
    %49 = arith.divf %47, %48 : vector<1x256xf32>
    %50 = vector.extract_strided_slice %49 {offsets = [0, 0], sizes = [1, 128], strides = [1, 1]} : vector<1x256xf32> to vector<1x128xf32>
    %51 = vector.extract_strided_slice %49 {offsets = [0, 128], sizes = [1, 128], strides = [1, 1]} : vector<1x256xf32> to vector<1x128xf32>
    %52 = vector.extract_strided_slice %13 {offsets = [1, 0], sizes = [1, 128], strides = [1, 1]} : vector<4x128xf32> to vector<1x128xf32>
    %53 = vector.extract_strided_slice %41 {offsets = [0, 256], sizes = [1, 128], strides = [1, 1]} : vector<1x384xf32> to vector<1x128xf32>
    %54 = arith.addf %53, %14 : vector<1x128xf32>
    %55 = arith.mulf %50, %54 : vector<1x128xf32>
    %56 = arith.addf %52, %55 : vector<1x128xf32>
    %57 = math.tanh %56 : vector<1x128xf32>
    %cst_17 = arith.constant 1.000000e+00 : f32
    %58 = vector.broadcast %cst_17 : f32 to vector<1x128xf32>
    %59 = arith.subf %58, %51 : vector<1x128xf32>
    %60 = arith.mulf %59, %57 : vector<1x128xf32>
    %61 = arith.mulf %51, %38 : vector<1x128xf32>
    %62 = arith.addf %60, %61 : vector<1x128xf32>
    %c1 = arith.constant 1 : index
    %c0_18 = arith.constant 0 : index
    %63 = vector.load %arg12[%c1, %c0_18] : memref<4x128xf32, #tpu.memory_space<vmem>>, vector<1x128xf32>
    tpu.vector_store %arg12[%c1, %c0_18], %62 {strides = array<i32>} : memref<4x128xf32, #tpu.memory_space<vmem>>, vector<1x128xf32>,
    %64 = arith.truncf %62 : vector<1x128xf32> to vector<1x128xbf16>
    %cst_19 = arith.constant dense<0.000000e+00> : vector<1x384xf32>
    %65 = tpu.matmul %64, %2, %cst_19 {dimension_numbers = #tpu.dot_dimension_numbers<[1], [0], [0], [1], [0, 0, 1, 1], [], []>} : vector<1x128xbf16>, vector<128x384xbf16>, vector<1x384xf32> -> vector<1x384xf32>
    %66 = vector.extract_strided_slice %12 {offsets = [2, 0], sizes = [1, 256], strides = [1, 1]} : vector<4x256xf32> to vector<1x256xf32>
    %67 = vector.extract_strided_slice %65 {offsets = [0, 0], sizes = [1, 256], strides = [1, 1]} : vector<1x384xf32> to vector<1x256xf32>
    %68 = arith.addf %66, %67 : vector<1x256xf32>
    %69 = arith.negf %68 : vector<1x256xf32>
    %70 = math.exp %69 : vector<1x256xf32>
    %cst_20 = arith.constant 1.000000e+00 : f32
    %71 = vector.broadcast %cst_20 : f32 to vector<1x256xf32>
    %72 = arith.addf %71, %70 : vector<1x256xf32>
    %73 = arith.divf %71, %72 : vector<1x256xf32>
    %74 = vector.extract_strided_slice %73 {offsets = [0, 0], sizes = [1, 128], strides = [1, 1]} : vector<1x256xf32> to vector<1x128xf32>
    %75 = vector.extract_strided_slice %73 {offsets = [0, 128], sizes = [1, 128], strides = [1, 1]} : vector<1x256xf32> to vector<1x128xf32>
    %76 = vector.extract_strided_slice %13 {offsets = [2, 0], sizes = [1, 128], strides = [1, 1]} : vector<4x128xf32> to vector<1x128xf32>
    %77 = vector.extract_strided_slice %65 {offsets = [0, 256], sizes = [1, 128], strides = [1, 1]} : vector<1x384xf32> to vector<1x128xf32>
    %78 = arith.addf %77, %14 : vector<1x128xf32>
    %79 = arith.mulf %74, %78 : vector<1x128xf32>
    %80 = arith.addf %76, %79 : vector<1x128xf32>
    %81 = math.tanh %80 : vector<1x128xf32>
    %cst_21 = arith.constant 1.000000e+00 : f32
    %82 = vector.broadcast %cst_21 : f32 to vector<1x128xf32>
    %83 = arith.subf %82, %75 : vector<1x128xf32>
    %84 = arith.mulf %83, %81 : vector<1x128xf32>
    %85 = arith.mulf %75, %62 : vector<1x128xf32>
    %86 = arith.addf %84, %85 : vector<1x128xf32>
    %c2 = arith.constant 2 : index
    %c0_22 = arith.constant 0 : index
    %87 = vector.load %arg12[%c2, %c0_22] : memref<4x128xf32, #tpu.memory_space<vmem>>, vector<1x128xf32>
    tpu.vector_store %arg12[%c2, %c0_22], %86 {strides = array<i32>} : memref<4x128xf32, #tpu.memory_space<vmem>>, vector<1x128xf32>,
    %88 = arith.truncf %86 : vector<1x128xf32> to vector<1x128xbf16>
    %cst_23 = arith.constant dense<0.000000e+00> : vector<1x384xf32>
    %89 = tpu.matmul %88, %2, %cst_23 {dimension_numbers = #tpu.dot_dimension_numbers<[1], [0], [0], [1], [0, 0, 1, 1], [], []>} : vector<1x128xbf16>, vector<128x384xbf16>, vector<1x384xf32> -> vector<1x384xf32>
    %90 = vector.extract_strided_slice %12 {offsets = [3, 0], sizes = [1, 256], strides = [1, 1]} : vector<4x256xf32> to vector<1x256xf32>
    %91 = vector.extract_strided_slice %89 {offsets = [0, 0], sizes = [1, 256], strides = [1, 1]} : vector<1x384xf32> to vector<1x256xf32>
    %92 = arith.addf %90, %91 : vector<1x256xf32>
    %93 = arith.negf %92 : vector<1x256xf32>
    %94 = math.exp %93 : vector<1x256xf32>
    %cst_24 = arith.constant 1.000000e+00 : f32
    %95 = vector.broadcast %cst_24 : f32 to vector<1x256xf32>
    %96 = arith.addf %95, %94 : vector<1x256xf32>
    %97 = arith.divf %95, %96 : vector<1x256xf32>
    %98 = vector.extract_strided_slice %97 {offsets = [0, 0], sizes = [1, 128], strides = [1, 1]} : vector<1x256xf32> to vector<1x128xf32>
    %99 = vector.extract_strided_slice %97 {offsets = [0, 128], sizes = [1, 128], strides = [1, 1]} : vector<1x256xf32> to vector<1x128xf32>
    %100 = vector.extract_strided_slice %13 {offsets = [3, 0], sizes = [1, 128], strides = [1, 1]} : vector<4x128xf32> to vector<1x128xf32>
    %101 = vector.extract_strided_slice %89 {offsets = [0, 256], sizes = [1, 128], strides = [1, 1]} : vector<1x384xf32> to vector<1x128xf32>
    %102 = arith.addf %101, %14 : vector<1x128xf32>
    %103 = arith.mulf %98, %102 : vector<1x128xf32>
    %104 = arith.addf %100, %103 : vector<1x128xf32>
    %105 = math.tanh %104 : vector<1x128xf32>
    %cst_25 = arith.constant 1.000000e+00 : f32
    %106 = vector.broadcast %cst_25 : f32 to vector<1x128xf32>
    %107 = arith.subf %106, %99 : vector<1x128xf32>
    %108 = arith.mulf %107, %105 : vector<1x128xf32>
    %109 = arith.mulf %99, %86 : vector<1x128xf32>
    %110 = arith.addf %108, %109 : vector<1x128xf32>
    %c3 = arith.constant 3 : index
    %c0_26 = arith.constant 0 : index
    %111 = vector.load %arg12[%c3, %c0_26] : memref<4x128xf32, #tpu.memory_space<vmem>>, vector<1x128xf32>
    tpu.vector_store %arg12[%c3, %c0_26], %110 {strides = array<i32>} : memref<4x128xf32, #tpu.memory_space<vmem>>, vector<1x128xf32>,
    %c0_27 = arith.constant 0 : index
    %c0_28 = arith.constant 0 : index
    %112 = vector.load %arg12[%c0_27, %c0_28] : memref<4x128xf32, #tpu.memory_space<vmem>>, vector<4x128xf32>
    %cst_29 = arith.constant dense<0.000000e+00> : vector<4xf32>
    %113 = vector.multi_reduction <add>, %112, %cst_29 [1] : vector<4x128xf32> to vector<4xf32>
    %114 = vector.shape_cast %113 : vector<4xf32> to vector<4x1xf32>
    %cst_30 = arith.constant 1.280000e+02 : f32
    %115 = vector.broadcast %cst_30 : f32 to vector<4x1xf32>
    %116 = arith.divf %114, %115 : vector<4x1xf32>
    %117 = vector.broadcast %116 : vector<4x1xf32> to vector<4x128xf32>
    %118 = arith.subf %112, %117 : vector<4x128xf32>
    %119 = arith.mulf %118, %118 : vector<4x128xf32>
    %cst_31 = arith.constant dense<0.000000e+00> : vector<4xf32>
    %120 = vector.multi_reduction <add>, %119, %cst_31 [1] : vector<4x128xf32> to vector<4xf32>
    %121 = vector.shape_cast %120 : vector<4xf32> to vector<4x1xf32>
    %cst_32 = arith.constant 1.280000e+02 : f32
    %122 = vector.broadcast %cst_32 : f32 to vector<4x1xf32>
    %123 = arith.divf %121, %122 : vector<4x1xf32>
    %124 = vector.broadcast %116 : vector<4x1xf32> to vector<4x128xf32>
    %125 = arith.subf %112, %124 : vector<4x128xf32>
    %cst_33 = arith.constant 9.99999974E-6 : f32
    %126 = vector.broadcast %cst_33 : f32 to vector<4x1xf32>
    %127 = arith.addf %123, %126 : vector<4x1xf32>
    %128 = math.rsqrt %127 : vector<4x1xf32>
    %129 = vector.broadcast %128 : vector<4x1xf32> to vector<4x128xf32>
    %130 = arith.mulf %125, %129 : vector<4x128xf32>
    %c0_34 = arith.constant 0 : index
    %c0_35 = arith.constant 0 : index
    %131 = vector.load %arg6[%c0_34, %c0_35] : memref<1x128xf32, #tpu.memory_space<vmem>>, vector<1x128xf32>
    %132 = vector.broadcast %131 : vector<1x128xf32> to vector<4x128xf32>
    %133 = arith.mulf %130, %132 : vector<4x128xf32>
    %c0_36 = arith.constant 0 : index
    %c0_37 = arith.constant 0 : index
    %134 = vector.load %arg7[%c0_36, %c0_37] : memref<1x128xf32, #tpu.memory_space<vmem>>, vector<1x128xf32>
    %135 = vector.broadcast %134 : vector<1x128xf32> to vector<4x128xf32>
    %136 = arith.addf %133, %135 : vector<4x128xf32>
    %cst_38 = arith.constant 0.000000e+00 : f32
    %137 = vector.broadcast %cst_38 : f32 to vector<4x128xf32>
    %138 = arith.maximumf %136, %137 : vector<4x128xf32>
    %139 = arith.truncf %138 : vector<4x128xf32> to vector<4x128xbf16>
    %140 = vector.extract_strided_slice %139 {offsets = [0, 0], sizes = [1, 128], strides = [1, 1]} : vector<4x128xbf16> to vector<1x128xbf16>
    %c0_39 = arith.constant 0 : index
    %c0_40 = arith.constant 0 : index
    %c0_41 = arith.constant 0 : index
    %141 = vector.load %arg8[%c0_39, %c0_40, %c0_41] : memref<4x128x128xbf16, #tpu.memory_space<vmem>>, vector<1x128x128xbf16>
    %142 = vector.shape_cast %141 : vector<1x128x128xbf16> to vector<128x128xbf16>
    %cst_42 = arith.constant dense<0.000000e+00> : vector<1x128xf32>
    %143 = tpu.matmul %140, %142, %cst_42 {dimension_numbers = #tpu.dot_dimension_numbers<[1], [0], [0], [1], [0, 0, 1, 1], [], []>} : vector<1x128xbf16>, vector<128x128xbf16>, vector<1x128xf32> -> vector<1x128xf32>
    %c0_43 = arith.constant 0 : index
    %c0_44 = arith.constant 0 : index
    %144 = vector.load %arg13[%c0_43, %c0_44] : memref<4x128xf32, #tpu.memory_space<vmem>>, vector<1x128xf32>
    tpu.vector_store %arg13[%c0_43, %c0_44], %143 {strides = array<i32>} : memref<4x128xf32, #tpu.memory_space<vmem>>, vector<1x128xf32>,
    %145 = vector.extract_strided_slice %139 {offsets = [1, 0], sizes = [1, 128], strides = [1, 1]} : vector<4x128xbf16> to vector<1x128xbf16>
    %c1_45 = arith.constant 1 : index
    %c0_46 = arith.constant 0 : index
    %c0_47 = arith.constant 0 : index
    %146 = vector.load %arg8[%c1_45, %c0_46, %c0_47] : memref<4x128x128xbf16, #tpu.memory_space<vmem>>, vector<1x128x128xbf16>
    %147 = vector.shape_cast %146 : vector<1x128x128xbf16> to vector<128x128xbf16>
    %cst_48 = arith.constant dense<0.000000e+00> : vector<1x128xf32>
    %148 = tpu.matmul %145, %147, %cst_48 {dimension_numbers = #tpu.dot_dimension_numbers<[1], [0], [0], [1], [0, 0, 1, 1], [], []>} : vector<1x128xbf16>, vector<128x128xbf16>, vector<1x128xf32> -> vector<1x128xf32>
    %c1_49 = arith.constant 1 : index
    %c0_50 = arith.constant 0 : index
    %149 = vector.load %arg13[%c1_49, %c0_50] : memref<4x128xf32, #tpu.memory_space<vmem>>, vector<1x128xf32>
    tpu.vector_store %arg13[%c1_49, %c0_50], %148 {strides = array<i32>} : memref<4x128xf32, #tpu.memory_space<vmem>>, vector<1x128xf32>,
    %150 = vector.extract_strided_slice %139 {offsets = [2, 0], sizes = [1, 128], strides = [1, 1]} : vector<4x128xbf16> to vector<1x128xbf16>
    %c2_51 = arith.constant 2 : index
    %c0_52 = arith.constant 0 : index
    %c0_53 = arith.constant 0 : index
    %151 = vector.load %arg8[%c2_51, %c0_52, %c0_53] : memref<4x128x128xbf16, #tpu.memory_space<vmem>>, vector<1x128x128xbf16>
    %152 = vector.shape_cast %151 : vector<1x128x128xbf16> to vector<128x128xbf16>
    %cst_54 = arith.constant dense<0.000000e+00> : vector<1x128xf32>
    %153 = tpu.matmul %150, %152, %cst_54 {dimension_numbers = #tpu.dot_dimension_numbers<[1], [0], [0], [1], [0, 0, 1, 1], [], []>} : vector<1x128xbf16>, vector<128x128xbf16>, vector<1x128xf32> -> vector<1x128xf32>
    %c2_55 = arith.constant 2 : index
    %c0_56 = arith.constant 0 : index
    %154 = vector.load %arg13[%c2_55, %c0_56] : memref<4x128xf32, #tpu.memory_space<vmem>>, vector<1x128xf32>
    tpu.vector_store %arg13[%c2_55, %c0_56], %153 {strides = array<i32>} : memref<4x128xf32, #tpu.memory_space<vmem>>, vector<1x128xf32>,
    %155 = vector.extract_strided_slice %139 {offsets = [3, 0], sizes = [1, 128], strides = [1, 1]} : vector<4x128xbf16> to vector<1x128xbf16>
    %c3_57 = arith.constant 3 : index
    %c0_58 = arith.constant 0 : index
    %c0_59 = arith.constant 0 : index
    %156 = vector.load %arg8[%c3_57, %c0_58, %c0_59] : memref<4x128x128xbf16, #tpu.memory_space<vmem>>, vector<1x128x128xbf16>
    %157 = vector.shape_cast %156 : vector<1x128x128xbf16> to vector<128x128xbf16>
    %cst_60 = arith.constant dense<0.000000e+00> : vector<1x128xf32>
    %158 = tpu.matmul %155, %157, %cst_60 {dimension_numbers = #tpu.dot_dimension_numbers<[1], [0], [0], [1], [0, 0, 1, 1], [], []>} : vector<1x128xbf16>, vector<128x128xbf16>, vector<1x128xf32> -> vector<1x128xf32>
    %c3_61 = arith.constant 3 : index
    %c0_62 = arith.constant 0 : index
    %159 = vector.load %arg13[%c3_61, %c0_62] : memref<4x128xf32, #tpu.memory_space<vmem>>, vector<1x128xf32>
    tpu.vector_store %arg13[%c3_61, %c0_62], %158 {strides = array<i32>} : memref<4x128xf32, #tpu.memory_space<vmem>>, vector<1x128xf32>,
    %c0_63 = arith.constant 0 : index
    %c0_64 = arith.constant 0 : index
    %160 = vector.load %arg13[%c0_63, %c0_64] : memref<4x128xf32, #tpu.memory_space<vmem>>, vector<4x128xf32>
    %c0_65 = arith.constant 0 : index
    %c0_66 = arith.constant 0 : index
    %161 = vector.load %arg9[%c0_65, %c0_66] : memref<4x128xf32, #tpu.memory_space<vmem>>, vector<4x128xf32>
    %162 = arith.addf %160, %161 : vector<4x128xf32>
    %cst_67 = arith.constant 3.000000e+00 : f32
    %163 = vector.broadcast %cst_67 : f32 to vector<4x128xf32>
    %164 = arith.addf %162, %163 : vector<4x128xf32>
    %165 = arith.negf %164 : vector<4x128xf32>
    %166 = math.exp %165 : vector<4x128xf32>
    %cst_68 = arith.constant 1.000000e+00 : f32
    %167 = vector.broadcast %cst_68 : f32 to vector<4x128xf32>
    %168 = arith.addf %167, %166 : vector<4x128xf32>
    %169 = arith.divf %167, %168 : vector<4x128xf32>
    %c0_69 = arith.constant 0 : index
    %c0_70 = arith.constant 0 : index
    %170 = vector.load %arg10[%c0_69, %c0_70] : memref<4x128xf32, #tpu.memory_space<vmem>>, vector<4x128xf32>
    tpu.vector_store %arg10[%c0_69, %c0_70], %169 {strides = array<i32>} : memref<4x128xf32, #tpu.memory_space<vmem>>, vector<4x128xf32>,
    %cst_71 = arith.constant 2.500000e+00 : f32
    %171 = vector.broadcast %cst_71 : f32 to vector<4x128xf32>
    %172 = arith.mulf %164, %171 : vector<4x128xf32>
    %173 = arith.negf %172 : vector<4x128xf32>
    %174 = math.exp %173 : vector<4x128xf32>
    %cst_72 = arith.constant 1.000000e+00 : f32
    %175 = vector.broadcast %cst_72 : f32 to vector<4x128xf32>
    %176 = arith.addf %175, %174 : vector<4x128xf32>
    %177 = arith.divf %175, %176 : vector<4x128xf32>
    %c0_73 = arith.constant 0 : index
    %c0_74 = arith.constant 0 : index
    %178 = vector.load %arg11[%c0_73, %c0_74] : memref<4x128xf32, #tpu.memory_space<vmem>>, vector<4x128xf32>
    tpu.vector_store %arg11[%c0_73, %c0_74], %177 {strides = array<i32>} : memref<4x128xf32, #tpu.memory_space<vmem>>, vector<4x128xf32>,
    return
  }
  func.func @transform_0(%arg0: i32) -> (i32, i32) {
    %c0_i32 = arith.constant 0 : i32
    %c0_i32_0 = arith.constant 0 : i32
    %c0_i32_1 = arith.constant 0 : i32
    return %c0_i32, %c0_i32_0 : i32, i32
  }
  func.func @transform_1(%arg0: i32) -> (i32, i32) {
    %c0_i32 = arith.constant 0 : i32
    %c0_i32_0 = arith.constant 0 : i32
    %c0_i32_1 = arith.constant 0 : i32
    return %c0_i32, %c0_i32_0 : i32, i32
  }
  func.func @transform_2(%arg0: i32) -> (i32, i32) {
    %c0_i32 = arith.constant 0 : i32
    %c0_i32_0 = arith.constant 0 : i32
    %c0_i32_1 = arith.constant 0 : i32
    return %c0_i32, %c0_i32_0 : i32, i32
  }
  func.func @transform_3(%arg0: i32) -> (i32, i32) {
    %c0_i32 = arith.constant 0 : i32
    %c0_i32_0 = arith.constant 0 : i32
    %c0_i32_1 = arith.constant 0 : i32
    return %c0_i32, %c0_i32_0 : i32, i32
  }
  func.func @transform_4(%arg0: i32) -> (i32, i32) {
    %c0_i32 = arith.constant 0 : i32
    %c0_i32_0 = arith.constant 0 : i32
    %c0_i32_1 = arith.constant 0 : i32
    return %c0_i32, %c0_i32_0 : i32, i32
  }
  func.func @transform_5(%arg0: i32) -> (i32, i32) {
    %c0_i32 = arith.constant 0 : i32
    %c0_i32_0 = arith.constant 0 : i32
    %c0_i32_1 = arith.constant 0 : i32
    return %c0_i32, %c0_i32_0 : i32, i32
  }
  func.func @transform_6(%arg0: i32) -> (i32, i32) {
    %c0_i32 = arith.constant 0 : i32
    %c0_i32_0 = arith.constant 0 : i32
    %c0_i32_1 = arith.constant 0 : i32
    return %c0_i32, %c0_i32_0 : i32, i32
  }
  func.func @transform_7(%arg0: i32) -> (i32, i32, i32) {
    %c0_i32 = arith.constant 0 : i32
    %c0_i32_0 = arith.constant 0 : i32
    %c0_i32_1 = arith.constant 0 : i32
    %c0_i32_2 = arith.constant 0 : i32
    return %c0_i32, %c0_i32_0, %c0_i32_1 : i32, i32, i32
  }
  func.func @transform_8(%arg0: i32) -> (i32, i32) {
    %c0_i32 = arith.constant 0 : i32
    %c0_i32_0 = arith.constant 0 : i32
    %c0_i32_1 = arith.constant 0 : i32
    return %c0_i32, %c0_i32_0 : i32, i32
  }
  func.func @transform_9(%arg0: i32) -> (i32, i32) {
    %c0_i32 = arith.constant 0 : i32
    %c0_i32_0 = arith.constant 0 : i32
    %c0_i32_1 = arith.constant 0 : i32
    return %c0_i32, %c0_i32_0 : i32, i32
  }
  func.func @transform_10(%arg0: i32) -> (i32, i32) {
    %c0_i32 = arith.constant 0 : i32
    %c0_i32_0 = arith.constant 0 : i32
    %c0_i32_1 = arith.constant 0 : i32
    return %c0_i32, %c0_i32_0 : i32, i32
  }
}

</mosaic_0001>

<llo_original>
// kernel: gru_heads.1
$region0: #{gru_heads.1}
  #allocation0 [shape = 'u32[]', space=smem, size = 0x4, offset = 0x4, fixed_abs, tag = 'smem constant byte address 0x4 - core index']
  #allocation1 [shape = 'u32[144,128]{1,0:T(1,128)}', space=vmem, size = 0x12000, scoped, tag = 'internal scratch']
  #allocation2 [shape = 'f32[4,128]{1,0:T(4,128)}', space=vmem, size = 0x800, scoped, tag = 'scratch operand']
  #allocation3 [shape = 'f32[4,128]{1,0:T(4,128)}', space=vmem, size = 0x800, scoped, tag = 'scratch operand']
  %s0 = inlined_call_operand.vmem [shape: f32[4,64], index: 0, kind: input, shape index: {}]
  %s1 = inlined_call_operand.vmem [shape: bf16[64,384], index: 1, kind: input, shape index: {}]
  %s2 = inlined_call_operand.vmem [shape: bf16[128,384], index: 2, kind: input, shape index: {}]
  %s3 = inlined_call_operand.vmem [shape: f32[1,384], index: 3, kind: input, shape index: {}]
  %s4 = inlined_call_operand.vmem [shape: f32[1,384], index: 4, kind: input, shape index: {}]
  %s5 = inlined_call_operand.vmem [shape: f32[1,128], index: 5, kind: input, shape index: {}]
  %s6 = inlined_call_operand.vmem [shape: f32[1,128], index: 6, kind: input, shape index: {}]
  %s7 = inlined_call_operand.vmem [shape: bf16[4,128,128], index: 7, kind: input, shape index: {}]
  %s8 = inlined_call_operand.vmem [shape: f32[4,128], index: 8, kind: input, shape index: {}]
  %s9 = inlined_call_operand.hbm [shape: f32[4,128], index: 9, kind: output, shape index: {0}]
  %s10 = inlined_call_operand.hbm [shape: f32[4,128], index: 10, kind: output, shape index: {1}]
  %11 = xla_tuple %s9, %s10
  %s12 = sld [smem:[#allocation0]]
  $region54: #{gru_heads.1} parent=0
    _
  %s14 = ssub.s32 1, %s12
  %s15 = scalar_select 0, %s14, %s12
  $region1: #{gru_heads.1} parent=0
    #allocation4 [shape = 'u8[2048]{0}', space=vmem, size = 0x800, scoped, tag = 'output window, operand 0, single buffered']
    #allocation5 [shape = 's32[1]{0}', space=sflag, size = 0x4, scoped, tag = 'scoped memory for gru_heads.1']
    #allocation6 [shape = 'u8[2048]{0}', space=vmem, size = 0x800, scoped, tag = 'output window, operand 1, single buffered']
    #allocation7 [shape = 's32[1]{0}', space=sflag, size = 0x4, scoped, tag = 'scoped memory for gru_heads.1']
    %16 = vsyncpa [#allocation5], 0
    %17 = vsyncpa [#allocation7], 0
    // Predicated region
    $region2: #{gru_heads.1} parent=1 // pred_check
      _
    $region3: #{gru_heads.1} parent=1 // pred_check_branch
      %19 = sbr.rel (0) target = $region5
    $region4: #{gru_heads.1} parent=1 // pred_region
      _
    $region5: #{gru_heads.1} parent=1 // pred_fallthru
      _
    // Predicated region
    $region6: #{gru_heads.1} parent=1 // pred_check
      _
    $region7: #{gru_heads.1} parent=1 // pred_check_branch
      %21 = sbr.rel (0) target = $region9
    $region8: #{gru_heads.1} parent=1 // pred_region
      _
    $region9: #{gru_heads.1} parent=1 // pred_fallthru
      _
    // Predicated region
    $region10: #{gru_heads.1} parent=1 // pred_check
      _
    $region11: #{gru_heads.1} parent=1 // pred_check_branch
      %23 = sbr.rel (0) target = $region13
    $region12: #{gru_heads.1} parent=1 // pred_region
      _
    $region13: #{gru_heads.1} parent=1 // pred_fallthru
      _
    // Predicated region
    $region14: #{gru_heads.1} parent=1 // pred_check
      _
    $region15: #{gru_heads.1} parent=1 // pred_check_branch
      %25 = sbr.rel (0) target = $region17
    $region16: #{gru_heads.1} parent=1 // pred_region
      _
    $region17: #{gru_heads.1} parent=1 // pred_fallthru
      _
    // Predicated region
    $region18: #{gru_heads.1} parent=1 // pred_check
      _
    $region19: #{gru_heads.1} parent=1 // pred_check_branch
      %27 = sbr.rel (0) target = $region21
    $region20: #{gru_heads.1} parent=1 // pred_region
      _
    $region21: #{gru_heads.1} parent=1 // pred_fallthru
      _
    // Predicated region
    $region22: #{gru_heads.1} parent=1 // pred_check
      _
    $region23: #{gru_heads.1} parent=1 // pred_check_branch
      %29 = sbr.rel (0) target = $region25
    $region24: #{gru_heads.1} parent=1 // pred_region
      _
    $region25: #{gru_heads.1} parent=1 // pred_fallthru
      _
    // Predicated region
    $region26: #{gru_heads.1} parent=1 // pred_check
      _
    $region27: #{gru_heads.1} parent=1 // pred_check_branch
      %31 = sbr.rel (0) target = $region29
    $region28: #{gru_heads.1} parent=1 // pred_region
      _
    $region29: #{gru_heads.1} parent=1 // pred_fallthru
      _
    // Predicated region
    $region30: #{gru_heads.1} parent=1 // pred_check
      _
    $region31: #{gru_heads.1} parent=1 // pred_check_branch
      %33 = sbr.rel (0) target = $region33
    $region32: #{gru_heads.1} parent=1 // pred_region
      _
    $region33: #{gru_heads.1} parent=1 // pred_fallthru
      _
    // Predicated region
    $region34: #{gru_heads.1} parent=1 // pred_check
      _
    $region35: #{gru_heads.1} parent=1 // pred_check_branch
      %35 = sbr.rel (0) target = $region37
    $region36: #{gru_heads.1} parent=1 // pred_region
      _
    $region37: #{gru_heads.1} parent=1 // pred_fallthru
      _
    %v37 = vld [vmem:[%s3] sm:$0x7]
    %v38 = vld [vmem:[%s4] sm:$0x7]
    %v39 = vld [vmem:[%s2] sm:$0xff]
    %v40 = vld [vmem:[%s2 + $0x8] sm:$0xf]
    %v41 = vld [vmem:[%s2 + $0xc] sm:$0xff]
    %v42 = vld [vmem:[%s2 + $0x14] sm:$0xf]
    %v43 = vld [vmem:[%s2 + $0x18] sm:$0xff]
    %v44 = vld [vmem:[%s2 + $0x20] sm:$0xf]
    %v45 = vld [vmem:[%s2 + $0x24] sm:$0xff]
    %v46 = vld [vmem:[%s2 + $0x2c] sm:$0xf]
    %v47 = vld [vmem:[%s2 + $0x30] sm:$0xff]
    %v48 = vld [vmem:[%s2 + $0x38] sm:$0xf]
    %v49 = vld [vmem:[%s2 + $0x3c] sm:$0xff]
    %v50 = vld [vmem:[%s2 + $0x44] sm:$0xf]
    %v51 = vld [vmem:[%s2 + $0x48] sm:$0xff]
    %v52 = vld [vmem:[%s2 + $0x50] sm:$0xf]
    %v53 = vld [vmem:[%s2 + $0x54] sm:$0xff]
    %v54 = vld [vmem:[%s2 + $0x5c] sm:$0xf]
    %v55 = vld [vmem:[%s2 + $0x60] sm:$0xff]
    %v56 = vld [vmem:[%s2 + $0x68] sm:$0xf]
    %v57 = vld [vmem:[%s2 + $0x6c] sm:$0xff]
    %v58 = vld [vmem:[%s2 + $0x74] sm:$0xf]
    %v59 = vld [vmem:[%s2 + $0x78] sm:$0xff]
    %v60 = vld [vmem:[%s2 + $0x80] sm:$0xf]
    %v61 = vld [vmem:[%s2 + $0x84] sm:$0xff]
    %v62 = vld [vmem:[%s2 + $0x8c] sm:$0xf]
    %v63 = vld [vmem:[%s2 + $0x90] sm:$0xff]
    %v64 = vld [vmem:[%s2 + $0x98] sm:$0xf]
    %v65 = vld [vmem:[%s2 + $0x9c] sm:$0xff]
    %v66 = vld [vmem:[%s2 + $0xa4] sm:$0xf]
    %v67 = vld [vmem:[%s2 + $0xa8] sm:$0xff]
    %v68 = vld [vmem:[%s2 + $0xb0] sm:$0xf]
    %v69 = vld [vmem:[%s2 + $0xb4] sm:$0xff]
    %v70 = vld [vmem:[%s2 + $0xbc] sm:$0xf]
    %v71 = vld [vmem:[%s0] sm:$0xf]
    %v72 = vpack.c.bf16 %v71, %v71
    %v73 = vld [vmem:[%s1] sm:$0xff]
    %v74 = vld [vmem:[%s1 + $0x8] sm:$0xf]
    %v75 = vld [vmem:[%s1 + $0xc] sm:$0xff]
    %v76 = vld [vmem:[%s1 + $0x14] sm:$0xf]
    %v77 = vld [vmem:[%s1 + $0x18] sm:$0xff]
    %v78 = vld [vmem:[%s1 + $0x20] sm:$0xf]
    %v79 = vld [vmem:[%s1 + $0x24] sm:$0xff]
    %v80 = vld [vmem:[%s1 + $0x2c] sm:$0xf]
    %v81 = vld [vmem:[%s1 + $0x30] sm:$0xff]
    %v82 = vld [vmem:[%s1 + $0x38] sm:$0xf]
    %v83 = vld [vmem:[%s1 + $0x3c] sm:$0xff]
    %v84 = vld [vmem:[%s1 + $0x44] sm:$0xf]
    %v85 = vld [vmem:[%s1 + $0x48] sm:$0xff]
    %v86 = vld [vmem:[%s1 + $0x50] sm:$0xf]
    %v87 = vld [vmem:[%s1 + $0x54] sm:$0xff]
    %v88 = vld [vmem:[%s1 + $0x5c] sm:$0xf]
    %v90 = vlaneseq
    %v91 = vshrl.u32 %v90, 7
    %v92 = vsub.s32 0, %v91
    %v93 = vrot.slane %v37, %v92
    %v94 = vlaneseq
    %v95 = vshrl.u32 %v94, 7
    %v96 = vsub.s32 1, %v95
    %v97 = vrot.slane %v37, %v96
    %v98 = vlaneseq
    %v99 = vshrl.u32 %v98, 7
    %v100 = vsub.s32 2, %v99
    %v101 = vrot.slane %v37, %v100
    %v121 = vunpack.c.l.b16 %v73
    %v122 = vunpack.c.h.b16 %v73
    %v123 = vunpack.c.l.b16 %v74
    %v124 = vunpack.c.l.b16 %v75
    %v125 = vunpack.c.h.b16 %v75
    %v126 = vunpack.c.l.b16 %v76
    %v127 = vunpack.c.l.b16 %v77
    %v128 = vunpack.c.h.b16 %v77
    %v129 = vunpack.c.l.b16 %v78
    %v130 = vunpack.c.l.b16 %v79
    %v131 = vunpack.c.h.b16 %v79
    %v132 = vunpack.c.l.b16 %v80
    %v133 = vunpack.c.l.b16 %v81
    %v134 = vunpack.c.h.b16 %v81
    %v135 = vunpack.c.l.b16 %v82
    %v136 = vunpack.c.l.b16 %v83
    %v137 = vunpack.c.h.b16 %v83
    %v138 = vunpack.c.l.b16 %v84
    %v139 = vunpack.c.l.b16 %v85
    %v140 = vunpack.c.h.b16 %v85
    %v141 = vunpack.c.l.b16 %v86
    %v142 = vunpack.c.l.b16 %v87
    %v143 = vunpack.c.h.b16 %v87
    %v144 = vunpack.c.l.b16 %v88
    %v145 = vpack.c.b16 %v124, %v121
    %v146 = vpack.c.b16 %v125, %v122
    %v147 = vpack.c.b16 %v126, %v123
    %v148 = vpack.c.b16 %v130, %v127
    %v149 = vpack.c.b16 %v131, %v128
    %v150 = vpack.c.b16 %v132, %v129
    %v151 = vpack.c.b16 %v136, %v133
    %v152 = vpack.c.b16 %v137, %v134
    %v153 = vpack.c.b16 %v138, %v135
    %v154 = vpack.c.b16 %v142, %v139
    %v155 = vpack.c.b16 %v143, %v140
    %v156 = vpack.c.b16 %v144, %v141
    %vm169 = vcmask 523264
    %v171 = vsel %vm169, %v72, 0
    %173 = vmatprep.subr.bf16.mxu0 %v146
    %174 = vmatpush1.bf16.msra.mxu0 %v145
    %175 = vmatprep.subr.bf16.mxu0 %v149
    %176 = vmatpush1.bf16.msra.mxu0 %v148
    %177 = vmatprep.subr.bf16.mxu0 %v152
    %178 = vmatpush1.bf16.msra.mxu0 %v151
    %179 = vmatprep.subr.bf16.mxu0 %v155
    %180 = vmatpush1.bf16.msra.mxu0 %v154
    %181 = vmatprep.subr.bf16.mxu0 0
    %182 = vmatpush1.bf16.msra.mxu0 0
    %183 = vmatprep.subr.bf16.mxu0 0
    %184 = vmatpush1.bf16.msra.mxu0 0
    %185 = vmatprep.subr.bf16.mxu0 0
    %186 = vmatpush1.bf16.msra.mxu0 0
    %187 = vmatprep.subr.bf16.mxu0 0
    %188 = vmatpush1.bf16.msra.mxu0 0
    %189 = vmatprep.subr.bf16.mxu0 0
    %190 = vmatpush1.bf16.msra.mxu0 0
    %191 = vmatprep.subr.bf16.mxu0 0
    %192 = vmatpush1.bf16.msra.mxu0 0
    %193 = vmatprep.subr.bf16.mxu0 0
    %194 = vmatpush1.bf16.msra.mxu0 0
    %195 = vmatprep.subr.bf16.mxu0 0
    %196 = vmatpush1.bf16.msra.mxu0 0
    %197 = vmatprep.subr.bf16.mxu0 0
    %198 = vmatpush1.bf16.msra.mxu0 0
    %199 = vmatprep.subr.bf16.mxu0 0
    %200 = vmatpush1.bf16.msra.mxu0 0
    %201 = vmatprep.subr.bf16.mxu0 0
    %202 = vmatpush1.bf16.msra.mxu0 0
    %203 = vmatprep.subr.bf16.mxu0 0
    %204 = vmatpush1.bf16.msra.mxu0 0
    %205 = vmatprep.mubr.bf16.mxu0 0
    %206 = vmatmul.mubr.bf16.gmra.mrb[0].mxu0 %v171
    %v207 = vpop.f32.mrb[0].mxu0
    %v208 = vadd.f32 %v93, %v207
    %v209 = vpop.f32.mrb[0].mxu0
    %v210 = vadd.f32 %v97, %v209
    %v211 = vpop.f32.mrb[0].mxu0
    %v212 = vpop.f32.mrb[0].mxu0
    %213 = vdwg.mxu0
    %214 = vmatprep.subr.bf16.mxu0 0
    %215 = vmatpush1.bf16.msra.mxu0 %v147
    %216 = vmatprep.subr.bf16.mxu0 0
    %217 = vmatpush1.bf16.msra.mxu0 %v150
    %218 = vmatprep.subr.bf16.mxu0 0
    %219 = vmatpush1.bf16.msra.mxu0 %v153
    %220 = vmatprep.subr.bf16.mxu0 0
    %221 = vmatpush1.bf16.msra.mxu0 %v156
    %222 = vmatprep.subr.bf16.mxu0 0
    %223 = vmatpush1.bf16.msra.mxu0 0
    %224 = vmatprep.subr.bf16.mxu0 0
    %225 = vmatpush1.bf16.msra.mxu0 0
    %226 = vmatprep.subr.bf16.mxu0 0
    %227 = vmatpush1.bf16.msra.mxu0 0
    %228 = vmatprep.subr.bf16.mxu0 0
    %229 = vmatpush1.bf16.msra.mxu0 0
    %230 = vmatprep.subr.bf16.mxu0 0
    %231 = vmatpush1.bf16.msra.mxu0 0
    %232 = vmatprep.subr.bf16.mxu0 0
    %233 = vmatpush1.bf16.msra.mxu0 0
    %234 = vmatprep.subr.bf16.mxu0 0
    %235 = vmatpush1.bf16.msra.mxu0 0
    %236 = vmatprep.subr.bf16.mxu0 0
    %237 = vmatpush1.bf16.msra.mxu0 0
    %238 = vmatprep.subr.bf16.mxu0 0
    %239 = vmatpush1.bf16.msra.mxu0 0
    %240 = vmatprep.subr.bf16.mxu0 0
    %241 = vmatpush1.bf16.msra.mxu0 0
    %242 = vmatprep.subr.bf16.mxu0 0
    %243 = vmatpush1.bf16.msra.mxu0 0
    %244 = vmatprep.subr.bf16.mxu0 0
    %245 = vmatpush1.bf16.msra.mxu0 0
    %246 = vmatprep.mubr.bf16.mxu0 0
    %247 = vmatmul.mubr.bf16.gmra.mrb[0].mxu0 %v171
    %v248 = vpop.f32.mrb[0].mxu0
    %v249 = vadd.f32 %v101, %v248
    %v250 = vpop.f32.mrb[0].mxu0
    %v251 = vpop.f32.mrb[0].mxu0
    %v252 = vpop.f32.mrb[0].mxu0
    %253 = vdwg.mxu0
    %v255 = vlaneseq
    %v256 = vshrl.u32 %v255, 7
    %v257 = vsub.s32 0, %v256
    %v258 = vrot.slane %v38, %v257
    %v259 = vlaneseq
    %v260 = vshrl.u32 %v259, 7
    %v261 = vsub.s32 1, %v260
    %v262 = vrot.slane %v38, %v261
    %v265 = vadd.f32 %v208, %v258
    %v266 = vadd.f32 %v210, %v262
    %v299 = vunpack.c.l.b16 %v39
    %v300 = vunpack.c.h.b16 %v39
    %v301 = vunpack.c.l.b16 %v40
    %v302 = vunpack.c.l.b16 %v41
    %v303 = vunpack.c.h.b16 %v41
    %v304 = vunpack.c.l.b16 %v42
    %v305 = vunpack.c.l.b16 %v43
    %v306 = vunpack.c.h.b16 %v43
    %v307 = vunpack.c.l.b16 %v44
    %v308 = vunpack.c.l.b16 %v45
    %v309 = vunpack.c.h.b16 %v45
    %v310 = vunpack.c.l.b16 %v46
    %v311 = vunpack.c.l.b16 %v47
    %v312 = vunpack.c.h.b16 %v47
    %v313 = vunpack.c.l.b16 %v48
    %v314 = vunpack.c.l.b16 %v49
    %v315 = vunpack.c.h.b16 %v49
    %v316 = vunpack.c.l.b16 %v50
    %v317 = vunpack.c.l.b16 %v51
    %v318 = vunpack.c.h.b16 %v51
    %v319 = vunpack.c.l.b16 %v52
    %v320 = vunpack.c.l.b16 %v53
    %v321 = vunpack.c.h.b16 %v53
    %v322 = vunpack.c.l.b16 %v54
    %v323 = vunpack.c.l.b16 %v55
    %v324 = vunpack.c.h.b16 %v55
    %v325 = vunpack.c.l.b16 %v56
    %v326 = vunpack.c.l.b16 %v57
    %v327 = vunpack.c.h.b16 %v57
    %v328 = vunpack.c.l.b16 %v58
    %v329 = vunpack.c.l.b16 %v59
    %v330 = vunpack.c.h.b16 %v59
    %v331 = vunpack.c.l.b16 %v60
    %v332 = vunpack.c.l.b16 %v61
    %v333 = vunpack.c.h.b16 %v61
    %v334 = vunpack.c.l.b16 %v62
    %v335 = vunpack.c.l.b16 %v63
    %v336 = vunpack.c.h.b16 %v63
    %v337 = vunpack.c.l.b16 %v64
    %v338 = vunpack.c.l.b16 %v65
    %v339 = vunpack.c.h.b16 %v65
    %v340 = vunpack.c.l.b16 %v66
    %v341 = vunpack.c.l.b16 %v67
    %v342 = vunpack.c.h.b16 %v67
    %v343 = vunpack.c.l.b16 %v68
    %v344 = vunpack.c.l.b16 %v69
    %v345 = vunpack.c.h.b16 %v69
    %v346 = vunpack.c.l.b16 %v70
    %v347 = vpack.c.b16 %v302, %v299
    %v348 = vpack.c.b16 %v303, %v300
    %v349 = vpack.c.b16 %v304, %v301
    %v350 = vpack.c.b16 %v308, %v305
    %v351 = vpack.c.b16 %v309, %v306
    %v352 = vpack.c.b16 %v310, %v307
    %v353 = vpack.c.b16 %v314, %v311
    %v354 = vpack.c.b16 %v315, %v312
    %v355 = vpack.c.b16 %v316, %v313
    %v356 = vpack.c.b16 %v320, %v317
    %v357 = vpack.c.b16 %v321, %v318
    %v358 = vpack.c.b16 %v322, %v319
    %v359 = vpack.c.b16 %v326, %v323
    %v360 = vpack.c.b16 %v327, %v324
    %v361 = vpack.c.b16 %v328, %v325
    %v362 = vpack.c.b16 %v332, %v329
    %v363 = vpack.c.b16 %v333, %v330
    %v364 = vpack.c.b16 %v334, %v331
    %v365 = vpack.c.b16 %v338, %v335
    %v366 = vpack.c.b16 %v339, %v336
    %v367 = vpack.c.b16 %v340, %v337
    %v368 = vpack.c.b16 %v344, %v341
    %v369 = vpack.c.b16 %v345, %v342
    %v370 = vpack.c.b16 %v346, %v343
    %395 = vmatprep.subr.bf16.mxu0 %v348
    %396 = vmatpush1.bf16.msra.mxu0 %v347
    %397 = vmatprep.subr.bf16.mxu0 %v351
    %398 = vmatpush1.bf16.msra.mxu0 %v350
    %399 = vmatprep.subr.bf16.mxu0 %v354
    %400 = vmatpush1.bf16.msra.mxu0 %v353
    %401 = vmatprep.subr.bf16.mxu0 %v357
    %402 = vmatpush1.bf16.msra.mxu0 %v356
    %403 = vmatprep.subr.bf16.mxu0 %v360
    %404 = vmatpush1.bf16.msra.mxu0 %v359
    %405 = vmatprep.subr.bf16.mxu0 %v363
    %406 = vmatpush1.bf16.msra.mxu0 %v362
    %407 = vmatprep.subr.bf16.mxu0 %v366
    %408 = vmatpush1.bf16.msra.mxu0 %v365
    %409 = vmatprep.subr.bf16.mxu0 %v369
    %410 = vmatpush1.bf16.msra.mxu0 %v368
    %411 = vmatprep.subr.bf16.mxu0 0
    %412 = vmatpush1.bf16.msra.mxu0 0
    %413 = vmatprep.subr.bf16.mxu0 0
    %414 = vmatpush1.bf16.msra.mxu0 0
    %415 = vmatprep.subr.bf16.mxu0 0
    %416 = vmatpush1.bf16.msra.mxu0 0
    %417 = vmatprep.subr.bf16.mxu0 0
    %418 = vmatpush1.bf16.msra.mxu0 0
    %419 = vmatprep.subr.bf16.mxu0 0
    %420 = vmatpush1.bf16.msra.mxu0 0
    %421 = vmatprep.subr.bf16.mxu0 0
    %422 = vmatpush1.bf16.msra.mxu0 0
    %423 = vmatprep.subr.bf16.mxu0 0
    %424 = vmatpush1.bf16.msra.mxu0 0
    %425 = vmatprep.subr.bf16.mxu0 0
    %426 = vmatpush1.bf16.msra.mxu0 0
    %427 = vmatprep.mubr.bf16.mxu0 0
    %428 = vmatmul.mubr.bf16.gmra.mrb[0].mxu0 0
    %v429 = vpop.f32.mrb[0].mxu0
    %v430 = vadd.f32 0.0, %v429
    %v431 = vpop.f32.mrb[0].mxu0
    %v432 = vadd.f32 0.0, %v431
    %v433 = vpop.f32.mrb[0].mxu0
    %v434 = vpop.f32.mrb[0].mxu0
    %435 = vdwg.mxu0
    %436 = vmatprep.subr.bf16.mxu0 0
    %437 = vmatpush1.bf16.msra.mxu0 %v349
    %438 = vmatprep.subr.bf16.mxu0 0
    %439 = vmatpush1.bf16.msra.mxu0 %v352
    %440 = vmatprep.subr.bf16.mxu0 0
    %441 = vmatpush1.bf16.msra.mxu0 %v355
    %442 = vmatprep.subr.bf16.mxu0 0
    %443 = vmatpush1.bf16.msra.mxu0 %v358
    %444 = vmatprep.subr.bf16.mxu0 0
    %445 = vmatpush1.bf16.msra.mxu0 %v361
    %446 = vmatprep.subr.bf16.mxu0 0
    %447 = vmatpush1.bf16.msra.mxu0 %v364
    %448 = vmatprep.subr.bf16.mxu0 0
    %449 = vmatpush1.bf16.msra.mxu0 %v367
    %450 = vmatprep.subr.bf16.mxu0 0
    %451 = vmatpush1.bf16.msra.mxu0 %v370
    %452 = vmatprep.subr.bf16.mxu0 0
    %453 = vmatpush1.bf16.msra.mxu0 0
    %454 = vmatprep.subr.bf16.mxu0 0
    %455 = vmatpush1.bf16.msra.mxu0 0
    %456 = vmatprep.subr.bf16.mxu0 0
    %457 = vmatpush1.bf16.msra.mxu0 0
    %458 = vmatprep.subr.bf16.mxu0 0
    %459 = vmatpush1.bf16.msra.mxu0 0
    %460 = vmatprep.subr.bf16.mxu0 0
    %461 = vmatpush1.bf16.msra.mxu0 0
    %462 = vmatprep.subr.bf16.mxu0 0
    %463 = vmatpush1.bf16.msra.mxu0 0
    %464 = vmatprep.subr.bf16.mxu0 0
    %465 = vmatpush1.bf16.msra.mxu0 0
    %466 = vmatprep.subr.bf16.mxu0 0
    %467 = vmatpush1.bf16.msra.mxu0 0
    %468 = vmatprep.mubr.bf16.mxu0 0
    %469 = vmatmul.mubr.bf16.gmra.mrb[0].mxu0 0
    %v470 = vpop.f32.mrb[0].mxu0
    %v471 = vadd.f32 0.0, %v470
    %v472 = vpop.f32.mrb[0].mxu0
    %v473 = vpop.f32.mrb[0].mxu0
    %v474 = vpop.f32.mrb[0].mxu0
    %475 = vdwg.mxu0
    %v476 = vadd.f32 %v265, %v430
    %v477 = vadd.f32 %v266, %v432
    %v478 = vxor.u32 %v476, 2147483648
    %v479 = vxor.u32 %v477, 2147483648
    %v480 = vmul.f32 %v478, 1.442695
    %v481 = vpow.pop %v480
    %v482 = vmul.f32 %v479, 1.442695
    %v483 = vpow.pop %v482
    %v484 = vadd.f32 %v481, 1.0
    %v485 = vadd.f32 %v483, 1.0
    %v486 = vrcp.pop %v484
    %v487 = vmul.f32 1.0, %v486
    %v488 = vrcp.pop %v485
    %v489 = vmul.f32 1.0, %v488
    %v490 = vlaneseq
    %v491 = vshrl.u32 %v490, 7
    %v492 = vsub.s32 2, %v491
    %v493 = vrot.slane %v38, %v492
    %v495 = vadd.f32 %v471, %v493
    %v496 = vmul.f32 %v487, %v495
    %v497 = vadd.f32 %v249, %v496
    %v498 = vtanh.pop %v497
    %v499 = vsub.f32 1.0, %v489
    %v500 = vmul.f32 %v499, %v498
    %v501 = vmul.f32 %v489, 0.0
    %v502 = vadd.f32 %v500, %v501
    %503 = vst [vmem:[#allocation2] sm:$0x1] %v502
    %v504 = vpack.c.bf16 %v502, %v502
    %505 = vmatprep.subr.bf16.mxu0 %v348
    %506 = vmatpush1.bf16.msra.mxu0 %v347
    %507 = vmatprep.subr.bf16.mxu0 %v351
    %508 = vmatpush1.bf16.msra.mxu0 %v350
    %509 = vmatprep.subr.bf16.mxu0 %v354
    %510 = vmatpush1.bf16.msra.mxu0 %v353
    %511 = vmatprep.subr.bf16.mxu0 %v357
    %512 = vmatpush1.bf16.msra.mxu0 %v356
    %513 = vmatprep.subr.bf16.mxu0 %v360
    %514 = vmatpush1.bf16.msra.mxu0 %v359
    %515 = vmatprep.subr.bf16.mxu0 %v363
    %516 = vmatpush1.bf16.msra.mxu0 %v362
    %517 = vmatprep.subr.bf16.mxu0 %v366
    %518 = vmatpush1.bf16.msra.mxu0 %v365
    %519 = vmatprep.subr.bf16.mxu0 %v369
    %520 = vmatpush1.bf16.msra.mxu0 %v368
    %521 = vmatprep.subr.bf16.mxu0 0
    %522 = vmatpush1.bf16.msra.mxu0 0
    %523 = vmatprep.subr.bf16.mxu0 0
    %524 = vmatpush1.bf16.msra.mxu0 0
    %525 = vmatprep.subr.bf16.mxu0 0
    %526 = vmatpush1.bf16.msra.mxu0 0
    %527 = vmatprep.subr.bf16.mxu0 0
    %528 = vmatpush1.bf16.msra.mxu0 0
    %529 = vmatprep.subr.bf16.mxu0 0
    %530 = vmatpush1.bf16.msra.mxu0 0
    %531 = vmatprep.subr.bf16.mxu0 0
    %532 = vmatpush1.bf16.msra.mxu0 0
    %533 = vmatprep.subr.bf16.mxu0 0
    %534 = vmatpush1.bf16.msra.mxu0 0
    %535 = vmatprep.subr.bf16.mxu0 0
    %536 = vmatpush1.bf16.msra.mxu0 0
    %537 = vmatprep.mubr.bf16.mxu0 0
    %538 = vmatmul.mubr.bf16.gmra.mrb[0].mxu0 %v504
    %v539 = vpop.f32.mrb[0].mxu0
    %v540 = vadd.f32 0.0, %v539
    %v541 = vpop.f32.mrb[0].mxu0
    %v542 = vadd.f32 0.0, %v541
    %v543 = vpop.f32.mrb[0].mxu0
    %v544 = vpop.f32.mrb[0].mxu0
    %545 = vdwg.mxu0
    %546 = vmatprep.subr.bf16.mxu0 0
    %547 = vmatpush1.bf16.msra.mxu0 %v349
    %548 = vmatprep.subr.bf16.mxu0 0
    %549 = vmatpush1.bf16.msra.mxu0 %v352
    %550 = vmatprep.subr.bf16.mxu0 0
    %551 = vmatpush1.bf16.msra.mxu0 %v355
    %552 = vmatprep.subr.bf16.mxu0 0
    %553 = vmatpush1.bf16.msra.mxu0 %v358
    %554 = vmatprep.subr.bf16.mxu0 0
    %555 = vmatpush1.bf16.msra.mxu0 %v361
    %556 = vmatprep.subr.bf16.mxu0 0
    %557 = vmatpush1.bf16.msra.mxu0 %v364
    %558 = vmatprep.subr.bf16.mxu0 0
    %559 = vmatpush1.bf16.msra.mxu0 %v367
    %560 = vmatprep.subr.bf16.mxu0 0
    %561 = vmatpush1.bf16.msra.mxu0 %v370
    %562 = vmatprep.subr.bf16.mxu0 0
    %563 = vmatpush1.bf16.msra.mxu0 0
    %564 = vmatprep.subr.bf16.mxu0 0
    %565 = vmatpush1.bf16.msra.mxu0 0
    %566 = vmatprep.subr.bf16.mxu0 0
    %567 = vmatpush1.bf16.msra.mxu0 0
    %568 = vmatprep.subr.bf16.mxu0 0
    %569 = vmatpush1.bf16.msra.mxu0 0
    %570 = vmatprep.subr.bf16.mxu0 0
    %571 = vmatpush1.bf16.msra.mxu0 0
    %572 = vmatprep.subr.bf16.mxu0 0
    %573 = vmatpush1.bf16.msra.mxu0 0
    %574 = vmatprep.subr.bf16.mxu0 0
    %575 = vmatpush1.bf16.msra.mxu0 0
    %576 = vmatprep.subr.bf16.mxu0 0
    %577 = vmatpush1.bf16.msra.mxu0 0
    %578 = vmatprep.mubr.bf16.mxu0 0
    %579 = vmatmul.mubr.bf16.gmra.mrb[0].mxu0 %v504
    %v580 = vpop.f32.mrb[0].mxu0
    %v581 = vadd.f32 0.0, %v580
    %v582 = vpop.f32.mrb[0].mxu0
    %v583 = vpop.f32.mrb[0].mxu0
    %v584 = vpop.f32.mrb[0].mxu0
    %585 = vdwg.mxu0
    %v588 = vrot.slane %v540, 7
    %v589 = vrot.slane %v542, 7
    %v592 = vadd.f32 %v265, %v588
    %v593 = vadd.f32 %v266, %v589
    %v594 = vxor.u32 %v592, 2147483648
    %v595 = vxor.u32 %v593, 2147483648
    %v596 = vmul.f32 %v594, 1.442695
    %v597 = vpow.pop %v596
    %v598 = vmul.f32 %v595, 1.442695
    %v599 = vpow.pop %v598
    %v600 = vadd.f32 %v597, 1.0
    %v601 = vadd.f32 %v599, 1.0
    %v602 = vrcp.pop %v600
    %v603 = vmul.f32 1.0, %v602
    %v604 = vrcp.pop %v601
    %v605 = vmul.f32 1.0, %v604
    %v606 = vadd.f32 %v581, %v493
    %v608 = vrot.slane %v606, 7
    %v610 = vmul.f32 %v603, %v608
    %v611 = vadd.f32 %v249, %v610
    %v612 = vtanh.pop %v611
    %v613 = vsub.f32 1.0, %v605
    %v614 = vmul.f32 %v613, %v612
    %v616 = vrot.slane %v502, 7
    %v618 = vmul.f32 %v605, %v616
    %v619 = vadd.f32 %v614, %v618
    %620 = vst [vmem:[#allocation2] sm:$0x2] %v619
    %v621 = vpack.c.bf16 %v619, %v619
    %v623 = vshrl.u32 %v621, 16
    %626 = vmatprep.subr.bf16.mxu0 %v348
    %627 = vmatpush1.bf16.msra.mxu0 %v347
    %628 = vmatprep.subr.bf16.mxu0 %v351
    %629 = vmatpush1.bf16.msra.mxu0 %v350
    %630 = vmatprep.subr.bf16.mxu0 %v354
    %631 = vmatpush1.bf16.msra.mxu0 %v353
    %632 = vmatprep.subr.bf16.mxu0 %v357
    %633 = vmatpush1.bf16.msra.mxu0 %v356
    %634 = vmatprep.subr.bf16.mxu0 %v360
    %635 = vmatpush1.bf16.msra.mxu0 %v359
    %636 = vmatprep.subr.bf16.mxu0 %v363
    %637 = vmatpush1.bf16.msra.mxu0 %v362
    %638 = vmatprep.subr.bf16.mxu0 %v366
    %639 = vmatpush1.bf16.msra.mxu0 %v365
    %640 = vmatprep.subr.bf16.mxu0 %v369
    %641 = vmatpush1.bf16.msra.mxu0 %v368
    %642 = vmatprep.subr.bf16.mxu0 0
    %643 = vmatpush1.bf16.msra.mxu0 0
    %644 = vmatprep.subr.bf16.mxu0 0
    %645 = vmatpush1.bf16.msra.mxu0 0
    %646 = vmatprep.subr.bf16.mxu0 0
    %647 = vmatpush1.bf16.msra.mxu0 0
    %648 = vmatprep.subr.bf16.mxu0 0
    %649 = vmatpush1.bf16.msra.mxu0 0
    %650 = vmatprep.subr.bf16.mxu0 0
    %651 = vmatpush1.bf16.msra.mxu0 0
    %652 = vmatprep.subr.bf16.mxu0 0
    %653 = vmatpush1.bf16.msra.mxu0 0
    %654 = vmatprep.subr.bf16.mxu0 0
    %655 = vmatpush1.bf16.msra.mxu0 0
    %656 = vmatprep.subr.bf16.mxu0 0
    %657 = vmatpush1.bf16.msra.mxu0 0
    %658 = vmatprep.mubr.bf16.mxu0 0
    %659 = vmatmul.mubr.bf16.gmra.mrb[0].mxu0 %v623
    %v660 = vpop.f32.mrb[0].mxu0
    %v661 = vadd.f32 0.0, %v660
    %v662 = vpop.f32.mrb[0].mxu0
    %v663 = vadd.f32 0.0, %v662
    %v664 = vpop.f32.mrb[0].mxu0
    %v665 = vpop.f32.mrb[0].mxu0
    %666 = vdwg.mxu0
    %667 = vmatprep.subr.bf16.mxu0 0
    %668 = vmatpush1.bf16.msra.mxu0 %v349
    %669 = vmatprep.subr.bf16.mxu0 0
    %670 = vmatpush1.bf16.msra.mxu0 %v352
    %671 = vmatprep.subr.bf16.mxu0 0
    %672 = vmatpush1.bf16.msra.mxu0 %v355
    %673 = vmatprep.subr.bf16.mxu0 0
    %674 = vmatpush1.bf16.msra.mxu0 %v358
    %675 = vmatprep.subr.bf16.mxu0 0
    %676 = vmatpush1.bf16.msra.mxu0 %v361
    %677 = vmatprep.subr.bf16.mxu0 0
    %678 = vmatpush1.bf16.msra.mxu0 %v364
    %679 = vmatprep.subr.bf16.mxu0 0
    %680 = vmatpush1.bf16.msra.mxu0 %v367
    %681 = vmatprep.subr.bf16.mxu0 0
    %682 = vmatpush1.bf16.msra.mxu0 %v370
    %683 = vmatprep.subr.bf16.mxu0 0
    %684 = vmatpush1.bf16.msra.mxu0 0
    %685 = vmatprep.subr.bf16.mxu0 0
    %686 = vmatpush1.bf16.msra.mxu0 0
    %687 = vmatprep.subr.bf16.mxu0 0
    %688 = vmatpush1.bf16.msra.mxu0 0
    %689 = vmatprep.subr.bf16.mxu0 0
    %690 = vmatpush1.bf16.msra.mxu0 0
    %691 = vmatprep.subr.bf16.mxu0 0
    %692 = vmatpush1.bf16.msra.mxu0 0
    %693 = vmatprep.subr.bf16.mxu0 0
    %694 = vmatpush1.bf16.msra.mxu0 0
    %695 = vmatprep.subr.bf16.mxu0 0
    %696 = vmatpush1.bf16.msra.mxu0 0
    %697 = vmatprep.subr.bf16.mxu0 0
    %698 = vmatpush1.bf16.msra.mxu0 0
    %699 = vmatprep.mubr.bf16.mxu0 0
    %700 = vmatmul.mubr.bf16.gmra.mrb[0].mxu0 %v623
    %v701 = vpop.f32.mrb[0].mxu0
    %v702 = vadd.f32 0.0, %v701
    %v703 = vpop.f32.mrb[0].mxu0
    %v704 = vpop.f32.mrb[0].mxu0
    %v705 = vpop.f32.mrb[0].mxu0
    %706 = vdwg.mxu0
    %v709 = vrot.slane %v661, 6
    %v710 = vrot.slane %v663, 6
    %v713 = vadd.f32 %v265, %v709
    %v714 = vadd.f32 %v266, %v710
    %v715 = vxor.u32 %v713, 2147483648
    %v716 = vxor.u32 %v714, 2147483648
    %v717 = vmul.f32 %v715, 1.442695
    %v718 = vpow.pop %v717
    %v719 = vmul.f32 %v716, 1.442695
    %v720 = vpow.pop %v719
    %v721 = vadd.f32 %v718, 1.0
    %v722 = vadd.f32 %v720, 1.0
    %v723 = vrcp.pop %v721
    %v724 = vmul.f32 1.0, %v723
    %v725 = vrcp.pop %v722
    %v726 = vmul.f32 1.0, %v725
    %v727 = vadd.f32 %v702, %v493
    %v729 = vrot.slane %v727, 6
    %v731 = vmul.f32 %v724, %v729
    %v732 = vadd.f32 %v249, %v731
    %v733 = vtanh.pop %v732
    %v734 = vsub.f32 1.0, %v726
    %v735 = vmul.f32 %v734, %v733
    %v737 = vrot.slane %v619, 7
    %v739 = vmul.f32 %v726, %v737
    %v740 = vadd.f32 %v735, %v739
    %741 = vst [vmem:[#allocation2] sm:$0x4] %v740
    %v742 = vpack.c.bf16 %v740, %v740
    %v744 = vrot.slane %v742, 1
    %746 = vmatprep.subr.bf16.mxu0 %v348
    %747 = vmatpush1.bf16.msra.mxu0 %v347
    %748 = vmatprep.subr.bf16.mxu0 %v351
    %749 = vmatpush1.bf16.msra.mxu0 %v350
    %750 = vmatprep.subr.bf16.mxu0 %v354
    %751 = vmatpush1.bf16.msra.mxu0 %v353
    %752 = vmatprep.subr.bf16.mxu0 %v357
    %753 = vmatpush1.bf16.msra.mxu0 %v356
    %754 = vmatprep.subr.bf16.mxu0 %v360
    %755 = vmatpush1.bf16.msra.mxu0 %v359
    %756 = vmatprep.subr.bf16.mxu0 %v363
    %757 = vmatpush1.bf16.msra.mxu0 %v362
    %758 = vmatprep.subr.bf16.mxu0 %v366
    %759 = vmatpush1.bf16.msra.mxu0 %v365
    %760 = vmatprep.subr.bf16.mxu0 %v369
    %761 = vmatpush1.bf16.msra.mxu0 %v368
    %762 = vmatprep.subr.bf16.mxu0 0
    %763 = vmatpush1.bf16.msra.mxu0 0
    %764 = vmatprep.subr.bf16.mxu0 0
    %765 = vmatpush1.bf16.msra.mxu0 0
    %766 = vmatprep.subr.bf16.mxu0 0
    %767 = vmatpush1.bf16.msra.mxu0 0
    %768 = vmatprep.subr.bf16.mxu0 0
    %769 = vmatpush1.bf16.msra.mxu0 0
    %770 = vmatprep.subr.bf16.mxu0 0
    %771 = vmatpush1.bf16.msra.mxu0 0
    %772 = vmatprep.subr.bf16.mxu0 0
    %773 = vmatpush1.bf16.msra.mxu0 0
    %774 = vmatprep.subr.bf16.mxu0 0
    %775 = vmatpush1.bf16.msra.mxu0 0
    %776 = vmatprep.subr.bf16.mxu0 0
    %777 = vmatpush1.bf16.msra.mxu0 0
    %778 = vmatprep.mubr.bf16.mxu0 0
    %779 = vmatmul.mubr.bf16.gmra.mrb[0].mxu0 %v744
    %v780 = vpop.f32.mrb[0].mxu0
    %v781 = vadd.f32 0.0, %v780
    %v782 = vpop.f32.mrb[0].mxu0
    %v783 = vadd.f32 0.0, %v782
    %v784 = vpop.f32.mrb[0].mxu0
    %v785 = vpop.f32.mrb[0].mxu0
    %786 = vdwg.mxu0
    %787 = vmatprep.subr.bf16.mxu0 0
    %788 = vmatpush1.bf16.msra.mxu0 %v349
    %789 = vmatprep.subr.bf16.mxu0 0
    %790 = vmatpush1.bf16.msra.mxu0 %v352
    %791 = vmatprep.subr.bf16.mxu0 0
    %792 = vmatpush1.bf16.msra.mxu0 %v355
    %793 = vmatprep.subr.bf16.mxu0 0
    %794 = vmatpush1.bf16.msra.mxu0 %v358
    %795 = vmatprep.subr.bf16.mxu0 0
    %796 = vmatpush1.bf16.msra.mxu0 %v361
    %797 = vmatprep.subr.bf16.mxu0 0
    %798 = vmatpush1.bf16.msra.mxu0 %v364
    %799 = vmatprep.subr.bf16.mxu0 0
    %800 = vmatpush1.bf16.msra.mxu0 %v367
    %801 = vmatprep.subr.bf16.mxu0 0
    %802 = vmatpush1.bf16.msra.mxu0 %v370
    %803 = vmatprep.subr.bf16.mxu0 0
    %804 = vmatpush1.bf16.msra.mxu0 0
    %805 = vmatprep.subr.bf16.mxu0 0
    %806 = vmatpush1.bf16.msra.mxu0 0
    %807 = vmatprep.subr.bf16.mxu0 0
    %808 = vmatpush1.bf16.msra.mxu0 0
    %809 = vmatprep.subr.bf16.mxu0 0
    %810 = vmatpush1.bf16.msra.mxu0 0
    %811 = vmatprep.subr.bf16.mxu0 0
    %812 = vmatpush1.bf16.msra.mxu0 0
    %813 = vmatprep.subr.bf16.mxu0 0
    %814 = vmatpush1.bf16.msra.mxu0 0
    %815 = vmatprep.subr.bf16.mxu0 0
    %816 = vmatpush1.bf16.msra.mxu0 0
    %817 = vmatprep.subr.bf16.mxu0 0
    %818 = vmatpush1.bf16.msra.mxu0 0
    %819 = vmatprep.mubr.bf16.mxu0 0
    %820 = vmatmul.mubr.bf16.gmra.mrb[0].mxu0 %v744
    %v821 = vpop.f32.mrb[0].mxu0
    %v822 = vadd.f32 0.0, %v821
    %v823 = vpop.f32.mrb[0].mxu0
    %v824 = vpop.f32.mrb[0].mxu0
    %v825 = vpop.f32.mrb[0].mxu0
    %826 = vdwg.mxu0
    %v829 = vrot.slane %v781, 5
    %v830 = vrot.slane %v783, 5
    %v833 = vadd.f32 %v265, %v829
    %v834 = vadd.f32 %v266, %v830
    %v835 = vxor.u32 %v833, 2147483648
    %v836 = vxor.u32 %v834, 2147483648
    %v837 = vmul.f32 %v835, 1.442695
    %v838 = vpow.pop %v837
    %v839 = vmul.f32 %v836, 1.442695
    %v840 = vpow.pop %v839
    %v841 = vadd.f32 %v838, 1.0
    %v842 = vadd.f32 %v840, 1.0
    %v843 = vrcp.pop %v841
    %v844 = vmul.f32 1.0, %v843
    %v845 = vrcp.pop %v842
    %v846 = vmul.f32 1.0, %v845
    %v847 = vadd.f32 %v822, %v493
    %v849 = vrot.slane %v847, 5
    %v851 = vmul.f32 %v844, %v849
    %v852 = vadd.f32 %v249, %v851
    %v853 = vtanh.pop %v852
    %v854 = vsub.f32 1.0, %v846
    %v855 = vmul.f32 %v854, %v853
    %v857 = vrot.slane %v740, 7
    %v859 = vmul.f32 %v846, %v857
    %v860 = vadd.f32 %v855, %v859
    %861 = vst [vmem:[#allocation2] sm:$0x8] %v860
    %v862 = vld [vmem:[#allocation2] sm:$0xf]
    %vm863 = vcmask 1043456
    %v864 = vsel %vm863, %v862, 0.0
    %865 = vadd.xlane.f32.xlu0 %v864
    %v866 = vpop.xlane.xlu0 %865
    %v867 = vrcp.pop 128.0
    %v868 = vmul.f32 %v866, %v867
    %v869 = vsub.f32 %v862, %v868
    %v870 = vmul.f32 %v869, %v869
    %v871 = vsel %vm863, %v870, 0.0
    %872 = vadd.xlane.f32.xlu0 %v871
    %v873 = vpop.xlane.xlu0 %872
    %v874 = vmul.f32 %v873, %v867
    %v875 = vadd.f32 %v874, 1e-05
    %v876 = vrsqrt.pop %v875
    %v877 = vmul.f32 %v869, %v876
    %v878 = vld [vmem:[%s5] sm:$0x1]
    %v880 = vlaneseq
    %v881 = vshrl.u32 %v880, 7
    %v882 = vsub.s32 0, %v881
    %v883 = vrot.slane %v878, %v882
    %v885 = vmul.f32 %v877, %v883
    %v886 = vld [vmem:[%s6] sm:$0x1]
    %v888 = vlaneseq
    %v889 = vshrl.u32 %v888, 7
    %v890 = vsub.s32 0, %v889
    %v891 = vrot.slane %v886, %v890
    %v893 = vadd.f32 %v885, %v891
    %v894 = vmax.f32 %v893, 0.0
    %v895 = vpack.c.bf16 %v894, %v894
    %v896 = vld [vmem:[%s7] sm:$0xf]
    %v897 = vld [vmem:[%s7 + $0x4] sm:$0xf]
    %v898 = vld [vmem:[%s7 + $0x8] sm:$0xf]
    %v899 = vld [vmem:[%s7 + $0xc] sm:$0xf]
    %v900 = vld [vmem:[%s7 + $0x10] sm:$0xf]
    %v901 = vld [vmem:[%s7 + $0x14] sm:$0xf]
    %v902 = vld [vmem:[%s7 + $0x18] sm:$0xf]
    %v903 = vld [vmem:[%s7 + $0x1c] sm:$0xf]
    %v904 = vld [vmem:[%s7 + $0x20] sm:$0xf]
    %v905 = vld [vmem:[%s7 + $0x24] sm:$0xf]
    %v906 = vld [vmem:[%s7 + $0x28] sm:$0xf]
    %v907 = vld [vmem:[%s7 + $0x2c] sm:$0xf]
    %v908 = vld [vmem:[%s7 + $0x30] sm:$0xf]
    %v909 = vld [vmem:[%s7 + $0x34] sm:$0xf]
    %v910 = vld [vmem:[%s7 + $0x38] sm:$0xf]
    %v911 = vld [vmem:[%s7 + $0x3c] sm:$0xf]
    %v928 = vunpack.c.l.b16 %v896
    %v929 = vunpack.c.l.b16 %v897
    %v930 = vunpack.c.l.b16 %v898
    %v931 = vunpack.c.l.b16 %v899
    %v932 = vunpack.c.l.b16 %v900
    %v933 = vunpack.c.l.b16 %v901
    %v934 = vunpack.c.l.b16 %v902
    %v935 = vunpack.c.l.b16 %v903
    %v936 = vunpack.c.l.b16 %v904
    %v937 = vunpack.c.l.b16 %v905
    %v938 = vunpack.c.l.b16 %v906
    %v939 = vunpack.c.l.b16 %v907
    %v940 = vunpack.c.l.b16 %v908
    %v941 = vunpack.c.l.b16 %v909
    %v942 = vunpack.c.l.b16 %v910
    %v943 = vunpack.c.l.b16 %v911
    %v944 = vpack.c.b16 %v929, %v928
    %v945 = vpack.c.b16 %v931, %v930
    %v946 = vpack.c.b16 %v933, %v932
    %v947 = vpack.c.b16 %v935, %v934
    %v948 = vpack.c.b16 %v937, %v936
    %v949 = vpack.c.b16 %v939, %v938
    %v950 = vpack.c.b16 %v941, %v940
    %v951 = vpack.c.b16 %v943, %v942
    %960 = vmatprep.subr.bf16.mxu0 0
    %961 = vmatpush1.bf16.msra.mxu0 %v944
    %962 = vmatprep.subr.bf16.mxu0 0
    %963 = vmatpush1.bf16.msra.mxu0 %v945
    %964 = vmatprep.subr.bf16.mxu0 0
    %965 = vmatpush1.bf16.msra.mxu0 %v946
    %966 = vmatprep.subr.bf16.mxu0 0
    %967 = vmatpush1.bf16.msra.mxu0 %v947
    %968 = vmatprep.subr.bf16.mxu0 0
    %969 = vmatpush1.bf16.msra.mxu0 %v948
    %970 = vmatprep.subr.bf16.mxu0 0
    %971 = vmatpush1.bf16.msra.mxu0 %v949
    %972 = vmatprep.subr.bf16.mxu0 0
    %973 = vmatpush1.bf16.msra.mxu0 %v950
    %974 = vmatprep.subr.bf16.mxu0 0
    %975 = vmatpush1.bf16.msra.mxu0 %v951
    %976 = vmatprep.subr.bf16.mxu0 0
    %977 = vmatpush1.bf16.msra.mxu0 0
    %978 = vmatprep.subr.bf16.mxu0 0
    %979 = vmatpush1.bf16.msra.mxu0 0
    %980 = vmatprep.subr.bf16.mxu0 0
    %981 = vmatpush1.bf16.msra.mxu0 0
    %982 = vmatprep.subr.bf16.mxu0 0
    %983 = vmatpush1.bf16.msra.mxu0 0
    %984 = vmatprep.subr.bf16.mxu0 0
    %985 = vmatpush1.bf16.msra.mxu0 0
    %986 = vmatprep.subr.bf16.mxu0 0
    %987 = vmatpush1.bf16.msra.mxu0 0
    %988 = vmatprep.subr.bf16.mxu0 0
    %989 = vmatpush1.bf16.msra.mxu0 0
    %990 = vmatprep.subr.bf16.mxu0 0
    %991 = vmatpush1.bf16.msra.mxu0 0
    %992 = vmatprep.mubr.bf16.mxu0 0
    %993 = vmatmul.mubr.bf16.gmra.mrb[0].mxu0 %v895
    %v994 = vpop.f32.mrb[0].mxu0
    %v995 = vadd.f32 0.0, %v994
    %v996 = vpop.f32.mrb[0].mxu0
    %v997 = vpop.f32.mrb[0].mxu0
    %v998 = vpop.f32.mrb[0].mxu0
    %999 = vdwg.mxu0
    %1000 = vst [vmem:[#allocation3] sm:$0x1] %v995
    %s1001 = scalar_lea.vmem %s7, 64
    %v1002 = vld [vmem:[%s1001] sm:$0xf]
    %v1003 = vld [vmem:[%s1001 + $0x4] sm:$0xf]
    %v1004 = vld [vmem:[%s1001 + $0x8] sm:$0xf]
    %v1005 = vld [vmem:[%s1001 + $0xc] sm:$0xf]
    %v1006 = vld [vmem:[%s1001 + $0x10] sm:$0xf]
    %v1007 = vld [vmem:[%s1001 + $0x14] sm:$0xf]
    %v1008 = vld [vmem:[%s1001 + $0x18] sm:$0xf]
    %v1009 = vld [vmem:[%s1001 + $0x1c] sm:$0xf]
    %v1010 = vld [vmem:[%s1001 + $0x20] sm:$0xf]
    %v1011 = vld [vmem:[%s1001 + $0x24] sm:$0xf]
    %v1012 = vld [vmem:[%s1001 + $0x28] sm:$0xf]
    %v1013 = vld [vmem:[%s1001 + $0x2c] sm:$0xf]
    %v1014 = vld [vmem:[%s1001 + $0x30] sm:$0xf]
    %v1015 = vld [vmem:[%s1001 + $0x34] sm:$0xf]
    %v1016 = vld [vmem:[%s1001 + $0x38] sm:$0xf]
    %v1017 = vld [vmem:[%s1001 + $0x3c] sm:$0xf]
    %v1019 = vshrl.u32 %v895, 16
    %v1038 = vunpack.c.l.b16 %v1002
    %v1039 = vunpack.c.l.b16 %v1003
    %v1040 = vunpack.c.l.b16 %v1004
    %v1041 = vunpack.c.l.b16 %v1005
    %v1042 = vunpack.c.l.b16 %v1006
    %v1043 = vunpack.c.l.b16 %v1007
    %v1044 = vunpack.c.l.b16 %v1008
    %v1045 = vunpack.c.l.b16 %v1009
    %v1046 = vunpack.c.l.b16 %v1010
    %v1047 = vunpack.c.l.b16 %v1011
    %v1048 = vunpack.c.l.b16 %v1012
    %v1049 = vunpack.c.l.b16 %v1013
    %v1050 = vunpack.c.l.b16 %v1014
    %v1051 = vunpack.c.l.b16 %v1015
    %v1052 = vunpack.c.l.b16 %v1016
    %v1053 = vunpack.c.l.b16 %v1017
    %v1054 = vpack.c.b16 %v1039, %v1038
    %v1055 = vpack.c.b16 %v1041, %v1040
    %v1056 = vpack.c.b16 %v1043, %v1042
    %v1057 = vpack.c.b16 %v1045, %v1044
    %v1058 = vpack.c.b16 %v1047, %v1046
    %v1059 = vpack.c.b16 %v1049, %v1048
    %v1060 = vpack.c.b16 %v1051, %v1050
    %v1061 = vpack.c.b16 %v1053, %v1052
    %1070 = vmatprep.subr.bf16.mxu0 0
    %1071 = vmatpush1.bf16.msra.mxu0 %v1054
    %1072 = vmatprep.subr.bf16.mxu0 0
    %1073 = vmatpush1.bf16.msra.mxu0 %v1055
    %1074 = vmatprep.subr.bf16.mxu0 0
    %1075 = vmatpush1.bf16.msra.mxu0 %v1056
    %1076 = vmatprep.subr.bf16.mxu0 0
    %1077 = vmatpush1.bf16.msra.mxu0 %v1057
    %1078 = vmatprep.subr.bf16.mxu0 0
    %1079 = vmatpush1.bf16.msra.mxu0 %v1058
    %1080 = vmatprep.subr.bf16.mxu0 0
    %1081 = vmatpush1.bf16.msra.mxu0 %v1059
    %1082 = vmatprep.subr.bf16.mxu0 0
    %1083 = vmatpush1.bf16.msra.mxu0 %v1060
    %1084 = vmatprep.subr.bf16.mxu0 0
    %1085 = vmatpush1.bf16.msra.mxu0 %v1061
    %1086 = vmatprep.subr.bf16.mxu0 0
    %1087 = vmatpush1.bf16.msra.mxu0 0
    %1088 = vmatprep.subr.bf16.mxu0 0
    %1089 = vmatpush1.bf16.msra.mxu0 0
    %1090 = vmatprep.subr.bf16.mxu0 0
    %1091 = vmatpush1.bf16.msra.mxu0 0
    %1092 = vmatprep.subr.bf16.mxu0 0
    %1093 = vmatpush1.bf16.msra.mxu0 0
    %1094 = vmatprep.subr.bf16.mxu0 0
    %1095 = vmatpush1.bf16.msra.mxu0 0
    %1096 = vmatprep.subr.bf16.mxu0 0
    %1097 = vmatpush1.bf16.msra.mxu0 0
    %1098 = vmatprep.subr.bf16.mxu0 0
    %1099 = vmatpush1.bf16.msra.mxu0 0
    %1100 = vmatprep.subr.bf16.mxu0 0
    %1101 = vmatpush1.bf16.msra.mxu0 0
    %1102 = vmatprep.mubr.bf16.mxu0 0
    %1103 = vmatmul.mubr.bf16.gmra.mrb[0].mxu0 %v1019
    %v1104 = vpop.f32.mrb[0].mxu0
    %v1105 = vadd.f32 0.0, %v1104
    %v1106 = vpop.f32.mrb[0].mxu0
    %v1107 = vpop.f32.mrb[0].mxu0
    %v1108 = vpop.f32.mrb[0].mxu0
    %1109 = vdwg.mxu0
    %1110 = vst [vmem:[#allocation3 + $0x1] sm:$0x1] %v1105
    %s1111 = scalar_lea.vmem %s7, 128
    %v1112 = vld [vmem:[%s1111] sm:$0xf]
    %v1113 = vld [vmem:[%s1111 + $0x4] sm:$0xf]
    %v1114 = vld [vmem:[%s1111 + $0x8] sm:$0xf]
    %v1115 = vld [vmem:[%s1111 + $0xc] sm:$0xf]
    %v1116 = vld [vmem:[%s1111 + $0x10] sm:$0xf]
    %v1117 = vld [vmem:[%s1111 + $0x14] sm:$0xf]
    %v1118 = vld [vmem:[%s1111 + $0x18] sm:$0xf]
    %v1119 = vld [vmem:[%s1111 + $0x1c] sm:$0xf]
    %v1120 = vld [vmem:[%s1111 + $0x20] sm:$0xf]
    %v1121 = vld [vmem:[%s1111 + $0x24] sm:$0xf]
    %v1122 = vld [vmem:[%s1111 + $0x28] sm:$0xf]
    %v1123 = vld [vmem:[%s1111 + $0x2c] sm:$0xf]
    %v1124 = vld [vmem:[%s1111 + $0x30] sm:$0xf]
    %v1125 = vld [vmem:[%s1111 + $0x34] sm:$0xf]
    %v1126 = vld [vmem:[%s1111 + $0x38] sm:$0xf]
    %v1127 = vld [vmem:[%s1111 + $0x3c] sm:$0xf]
    %v1129 = vrot.slane %v895, 1
    %v1147 = vunpack.c.l.b16 %v1112
    %v1148 = vunpack.c.l.b16 %v1113
    %v1149 = vunpack.c.l.b16 %v1114
    %v1150 = vunpack.c.l.b16 %v1115
    %v1151 = vunpack.c.l.b16 %v1116
    %v1152 = vunpack.c.l.b16 %v1117
    %v1153 = vunpack.c.l.b16 %v1118
    %v1154 = vunpack.c.l.b16 %v1119
    %v1155 = vunpack.c.l.b16 %v1120
    %v1156 = vunpack.c.l.b16 %v1121
    %v1157 = vunpack.c.l.b16 %v1122
    %v1158 = vunpack.c.l.b16 %v1123
    %v1159 = vunpack.c.l.b16 %v1124
    %v1160 = vunpack.c.l.b16 %v1125
    %v1161 = vunpack.c.l.b16 %v1126
    %v1162 = vunpack.c.l.b16 %v1127
    %v1163 = vpack.c.b16 %v1148, %v1147
    %v1164 = vpack.c.b16 %v1150, %v1149
    %v1165 = vpack.c.b16 %v1152, %v1151
    %v1166 = vpack.c.b16 %v1154, %v1153
    %v1167 = vpack.c.b16 %v1156, %v1155
    %v1168 = vpack.c.b16 %v1158, %v1157
    %v1169 = vpack.c.b16 %v1160, %v1159
    %v1170 = vpack.c.b16 %v1162, %v1161
    %1179 = vmatprep.subr.bf16.mxu0 0
    %1180 = vmatpush1.bf16.msra.mxu0 %v1163
    %1181 = vmatprep.subr.bf16.mxu0 0
    %1182 = vmatpush1.bf16.msra.mxu0 %v1164
    %1183 = vmatprep.subr.bf16.mxu0 0
    %1184 = vmatpush1.bf16.msra.mxu0 %v1165
    %1185 = vmatprep.subr.bf16.mxu0 0
    %1186 = vmatpush1.bf16.msra.mxu0 %v1166
    %1187 = vmatprep.subr.bf16.mxu0 0
    %1188 = vmatpush1.bf16.msra.mxu0 %v1167
    %1189 = vmatprep.subr.bf16.mxu0 0
    %1190 = vmatpush1.bf16.msra.mxu0 %v1168
    %1191 = vmatprep.subr.bf16.mxu0 0
    %1192 = vmatpush1.bf16.msra.mxu0 %v1169
    %1193 = vmatprep.subr.bf16.mxu0 0
    %1194 = vmatpush1.bf16.msra.mxu0 %v1170
    %1195 = vmatprep.subr.bf16.mxu0 0
    %1196 = vmatpush1.bf16.msra.mxu0 0
    %1197 = vmatprep.subr.bf16.mxu0 0
    %1198 = vmatpush1.bf16.msra.mxu0 0
    %1199 = vmatprep.subr.bf16.mxu0 0
    %1200 = vmatpush1.bf16.msra.mxu0 0
    %1201 = vmatprep.subr.bf16.mxu0 0
    %1202 = vmatpush1.bf16.msra.mxu0 0
    %1203 = vmatprep.subr.bf16.mxu0 0
    %1204 = vmatpush1.bf16.msra.mxu0 0
    %1205 = vmatprep.subr.bf16.mxu0 0
    %1206 = vmatpush1.bf16.msra.mxu0 0
    %1207 = vmatprep.subr.bf16.mxu0 0
    %1208 = vmatpush1.bf16.msra.mxu0 0
    %1209 = vmatprep.subr.bf16.mxu0 0
    %1210 = vmatpush1.bf16.msra.mxu0 0
    %1211 = vmatprep.mubr.bf16.mxu0 0
    %1212 = vmatmul.mubr.bf16.gmra.mrb[0].mxu0 %v1129
    %v1213 = vpop.f32.mrb[0].mxu0
    %v1214 = vadd.f32 0.0, %v1213
    %v1215 = vpop.f32.mrb[0].mxu0
    %v1216 = vpop.f32.mrb[0].mxu0
    %v1217 = vpop.f32.mrb[0].mxu0
    %1218 = vdwg.mxu0
    %1219 = vst [vmem:[#allocation3 + $0x2] sm:$0x1] %v1214
    %s1220 = scalar_lea.vmem %s7, 192
    %v1221 = vld [vmem:[%s1220] sm:$0xf]
    %v1222 = vld [vmem:[%s1220 + $0x4] sm:$0xf]
    %v1223 = vld [vmem:[%s1220 + $0x8] sm:$0xf]
    %v1224 = vld [vmem:[%s1220 + $0xc] sm:$0xf]
    %v1225 = vld [vmem:[%s1220 + $0x10] sm:$0xf]
    %v1226 = vld [vmem:[%s1220 + $0x14] sm:$0xf]
    %v1227 = vld [vmem:[%s1220 + $0x18] sm:$0xf]
    %v1228 = vld [vmem:[%s1220 + $0x1c] sm:$0xf]
    %v1229 = vld [vmem:[%s1220 + $0x20] sm:$0xf]
    %v1230 = vld [vmem:[%s1220 + $0x24] sm:$0xf]
    %v1231 = vld [vmem:[%s1220 + $0x28] sm:$0xf]
    %v1232 = vld [vmem:[%s1220 + $0x2c] sm:$0xf]
    %v1233 = vld [vmem:[%s1220 + $0x30] sm:$0xf]
    %v1234 = vld [vmem:[%s1220 + $0x34] sm:$0xf]
    %v1235 = vld [vmem:[%s1220 + $0x38] sm:$0xf]
    %v1236 = vld [vmem:[%s1220 + $0x3c] sm:$0xf]
    %v1237 = vrot.slane %v1019, 1
    %v1255 = vunpack.c.l.b16 %v1221
    %v1256 = vunpack.c.l.b16 %v1222
    %v1257 = vunpack.c.l.b16 %v1223
    %v1258 = vunpack.c.l.b16 %v1224
    %v1259 = vunpack.c.l.b16 %v1225
    %v1260 = vunpack.c.l.b16 %v1226
    %v1261 = vunpack.c.l.b16 %v1227
    %v1262 = vunpack.c.l.b16 %v1228
    %v1263 = vunpack.c.l.b16 %v1229
    %v1264 = vunpack.c.l.b16 %v1230
    %v1265 = vunpack.c.l.b16 %v1231
    %v1266 = vunpack.c.l.b16 %v1232
    %v1267 = vunpack.c.l.b16 %v1233
    %v1268 = vunpack.c.l.b16 %v1234
    %v1269 = vunpack.c.l.b16 %v1235
    %v1270 = vunpack.c.l.b16 %v1236
    %v1271 = vpack.c.b16 %v1256, %v1255
    %v1272 = vpack.c.b16 %v1258, %v1257
    %v1273 = vpack.c.b16 %v1260, %v1259
    %v1274 = vpack.c.b16 %v1262, %v1261
    %v1275 = vpack.c.b16 %v1264, %v1263
    %v1276 = vpack.c.b16 %v1266, %v1265
    %v1277 = vpack.c.b16 %v1268, %v1267
    %v1278 = vpack.c.b16 %v1270, %v1269
    %1287 = vmatprep.subr.bf16.mxu0 0
    %1288 = vmatpush1.bf16.msra.mxu0 %v1271
    %1289 = vmatprep.subr.bf16.mxu0 0
    %1290 = vmatpush1.bf16.msra.mxu0 %v1272
    %1291 = vmatprep.subr.bf16.mxu0 0
    %1292 = vmatpush1.bf16.msra.mxu0 %v1273
    %1293 = vmatprep.subr.bf16.mxu0 0
    %1294 = vmatpush1.bf16.msra.mxu0 %v1274
    %1295 = vmatprep.subr.bf16.mxu0 0
    %1296 = vmatpush1.bf16.msra.mxu0 %v1275
    %1297 = vmatprep.subr.bf16.mxu0 0
    %1298 = vmatpush1.bf16.msra.mxu0 %v1276
    %1299 = vmatprep.subr.bf16.mxu0 0
    %1300 = vmatpush1.bf16.msra.mxu0 %v1277
    %1301 = vmatprep.subr.bf16.mxu0 0
    %1302 = vmatpush1.bf16.msra.mxu0 %v1278
    %1303 = vmatprep.subr.bf16.mxu0 0
    %1304 = vmatpush1.bf16.msra.mxu0 0
    %1305 = vmatprep.subr.bf16.mxu0 0
    %1306 = vmatpush1.bf16.msra.mxu0 0
    %1307 = vmatprep.subr.bf16.mxu0 0
    %1308 = vmatpush1.bf16.msra.mxu0 0
    %1309 = vmatprep.subr.bf16.mxu0 0
    %1310 = vmatpush1.bf16.msra.mxu0 0
    %1311 = vmatprep.subr.bf16.mxu0 0
    %1312 = vmatpush1.bf16.msra.mxu0 0
    %1313 = vmatprep.subr.bf16.mxu0 0
    %1314 = vmatpush1.bf16.msra.mxu0 0
    %1315 = vmatprep.subr.bf16.mxu0 0
    %1316 = vmatpush1.bf16.msra.mxu0 0
    %1317 = vmatprep.subr.bf16.mxu0 0
    %1318 = vmatpush1.bf16.msra.mxu0 0
    %1319 = vmatprep.mubr.bf16.mxu0 0
    %1320 = vmatmul.mubr.bf16.gmra.mrb[0].mxu0 %v1237
    %v1321 = vpop.f32.mrb[0].mxu0
    %v1322 = vadd.f32 0.0, %v1321
    %v1323 = vpop.f32.mrb[0].mxu0
    %v1324 = vpop.f32.mrb[0].mxu0
    %v1325 = vpop.f32.mrb[0].mxu0
    %1326 = vdwg.mxu0
    %1327 = vst [vmem:[#allocation3 + $0x3] sm:$0x1] %v1322
    %v1328 = vld [vmem:[#allocation3] sm:$0xf]
    %v1329 = vld [vmem:[%s8] sm:$0xf]
    %v1330 = vadd.f32 %v1328, %v1329
    %v1331 = vadd.f32 %v1330, 3.0
    %v1332 = vxor.u32 %v1331, 2147483648
    %v1333 = vmul.f32 %v1332, 1.442695
    %v1334 = vpow.pop %v1333
    %v1335 = vadd.f32 %v1334, 1.0
    %v1336 = vrcp.pop %v1335
    %v1337 = vmul.f32 1.0, %v1336
    %1338 = vst [vmem:[#allocation4] sm:$0xf] %v1337
    %v1339 = vmul.f32 %v1331, 2.5
    %v1340 = vxor.u32 %v1339, 2147483648
    %v1341 = vmul.f32 %v1340, 1.442695
    %v1342 = vpow.pop %v1341
    %v1343 = vadd.f32 %v1342, 1.0
    %v1344 = vrcp.pop %v1343
    %v1345 = vmul.f32 1.0, %v1344
    %1346 = vst [vmem:[#allocation6] sm:$0xf] %v1345
    // Predicated region
    $region38: #{gru_heads.1} parent=1 // pred_check
      _
    $region39: #{gru_heads.1} parent=1 // pred_check_branch
      %1348 = sbr.rel (0) target = $region41
    $region40: #{gru_heads.1} parent=1 // pred_region
      %s1350 = ssub.s32 64, 64
      %1351 = vsyncadd [#allocation5], %s1350
      %s1353 = sshll.u32 [#allocation4], 4
      %s1354 = int_to_ptr.vmem [resolvable:$true] %s1353
      %1356 = dma.vmem_to_hbm [thread:$0]  %s1354, 64, %s9, [#allocation5]
    $region41: #{gru_heads.1} parent=1 // pred_fallthru
      _
    // Predicated region
    $region42: #{gru_heads.1} parent=1 // pred_check
      _
    $region43: #{gru_heads.1} parent=1 // pred_check_branch
      %1358 = sbr.rel (0) target = $region45
    $region44: #{gru_heads.1} parent=1 // pred_region
      %s1360 = ssub.s32 64, 64
      %1361 = vsyncadd [#allocation7], %s1360
      %s1363 = sshll.u32 [#allocation6], 4
      %s1364 = int_to_ptr.vmem [resolvable:$true] %s1363
      %1366 = dma.vmem_to_hbm [thread:$0]  %s1364, 64, %s10, [#allocation7]
    $region45: #{gru_heads.1} parent=1 // pred_fallthru
      _
    // Predicated region
    $region46: #{gru_heads.1} parent=1 // pred_check
      _
    $region47: #{gru_heads.1} parent=1 // pred_check_branch
      %1368 = sbr.rel (0) target = $region49
    $region48: #{gru_heads.1} parent=1 // pred_region
      %1369 = dma.done [#allocation5], 64
    $region49: #{gru_heads.1} parent=1 // pred_fallthru
      _
    // Predicated region
    $region50: #{gru_heads.1} parent=1 // pred_check
      _
    $region51: #{gru_heads.1} parent=1 // pred_check_branch
      %1371 = sbr.rel (0) target = $region53
    $region52: #{gru_heads.1} parent=1 // pred_region
      %1372 = dma.done [#allocation7], 64
    $region53: #{gru_heads.1} parent=1 // pred_fallthru
      _
    %1373 = vsyncpa [#allocation5], 1
    %1374 = vsyncpa [#allocation7], 1

</llo_original>
